<compile_context>
chip_gen: v6e
topology: v6e:2x2x1
jax: 0.10.0
libtpu: 0.0.40
codegen_flags: <defaults>
</compile_context>

<pallas_src>
import functools

import jax
import jax.numpy as jnp
from jax.experimental import pallas as pl
from jax.experimental.pallas import tpu as pltpu


def _dwconv_bn_relu_kernel(x_ref, w_ref, b_ref, o_ref, xpad_ref):
    """One (channel-block, batch) tile per grid step.

    x_ref    : (1, TCi, H, W)       input channel block (NCHW, lanes = W)
    w_ref    : (1, TCo, 9, W)       BN-folded depthwise weights, broadcast on W
    b_ref    : (1, TCo, W)          BN shift, broadcast on W
    o_ref    : (1, TCo, H, W)       output tile
    xpad_ref : (1, TCo, H+2, W+2)   f32 VMEM scratch: zero-padded input tile
    """
    TCi = x_ref.shape[1]
    TCo = o_ref.shape[1]
    H = o_ref.shape[2]
    W = o_ref.shape[3]
    mult = TCo // TCi
    Hp, Wp = H + 2, W + 2

    # ---- build the 1-pixel zero halo in VMEM (no HBM-side jnp.pad) ----
    zrow = jnp.zeros((1, TCo, 1, Wp), jnp.float32)
    zcol = jnp.zeros((1, TCo, Hp, 1), jnp.float32)
    xpad_ref[:, :, 0:1, :] = zrow
    xpad_ref[:, :, Hp - 1:Hp, :] = zrow
    xpad_ref[:, :, :, 0:1] = zcol
    xpad_ref[:, :, :, Wp - 1:Wp] = zcol

    x = x_ref[...].astype(jnp.float32)                 # (1, TCi, H, W)
    if mult != 1:
        # groups=inC with channel multiplier: expand in VMEM, not in HBM.
        x = jnp.repeat(x, mult, axis=1)                # (1, TCo, H, W)
    xpad_ref[:, :, 1:H + 1, 1:W + 1] = x

    # Load weights / shift once per grid step (hoisted out of all tap math).
    w = w_ref[...].astype(jnp.float32)                 # (1, TCo, 9, W)
    b = b_ref[...].astype(jnp.float32)                 # (1, TCo, W)

    def wk(t):                                         # per-tap weight slab
        return w[:, :, t, :][:, :, None, :]            # (1, TCo, 1, W)

    # ---- column taps: 3 lane-shifted window reads (vs 9 in v2) ----
    xl = xpad_ref[:, :, :, 0:W]          # x[.., w-1]   (1, TCo, Hp, W)
    xc = xpad_ref[:, :, :, 1:W + 1]      # x[.., w  ]
    xr = xpad_ref[:, :, :, 2:W + 2]      # x[.., w+1]

    # Per-row-offset column combinations (VPU multiply-adds).
    t0 = xl * wk(0) + xc * wk(1) + xr * wk(2)          # dy = 0 (top row)
    t1 = xl * wk(3) + xc * wk(4) + xr * wk(5)          # dy = 1 (mid row)
    t2 = xl * wk(6) + xc * wk(7) + xr * wk(8)          # dy = 2 (bot row)

    # Row combination: out[h] = t0[h] + t1[h+1] + t2[h+2] over padded rows.
    acc = t0[:, :, 0:H, :] + t1[:, :, 1:H + 1, :] + t2[:, :, 2:H + 2, :]
    acc = acc + b[:, :, None, :]
    o_ref[...] = jnp.maximum(acc, 0.0).astype(o_ref.dtype)


def _pick_block_channels(inC, mult, H, W, in_bytes, out_bytes, budget_bytes):
    """Largest divisor of inC whose per-step VMEM footprint fits the budget."""
    best = 1
    for tci in range(1, inC + 1):
        if inC % tci:
            continue
        tco = tci * mult
        need = (2 * tci * H * W * in_bytes              # input block (2 bufs)
                + 2 * tco * H * W * out_bytes           # output block (2 bufs)
                + 2 * tco * 10 * W * 4                  # weights + shift (2 bufs)
                + tco * (H + 2) * (W + 2) * 4           # padded VMEM scratch
                + 5 * tco * (H + 2) * W * 4)            # t0/t1/t2/acc temporaries
        if need <= budget_bytes:
            best = tci
    return best


@functools.partial(jax.jit, static_argnames=("eps", "block_channels"))
def dwconv_bn_relu(x, conv_w, gamma, beta, run_mean, run_var, eps=1e-5,
                   block_channels=None):
    """x: (N, inC, H, W) NCHW; conv_w: (outC, 1, 3, 3) grouped-conv weight
    with groups=inC (channel multiplier m = outC // inC)."""
    N, inC, H, W = x.shape
    outC = conv_w.shape[0]
    assert outC % inC == 0
    mult = outC // inC

    # ---- fold BatchNorm (inference) into per-channel scale / shift ----
    inv_std = 1.0 / jnp.sqrt(run_var.astype(jnp.float32) + eps)
    scale = gamma.astype(jnp.float32) * inv_std                  # (outC,)
    shift = beta.astype(jnp.float32) - run_mean.astype(jnp.float32) * scale
    w_eff = conv_w[:, 0, :, :].astype(jnp.float32) * scale[:, None, None]

    # ---- channel-block size: keep blocks a few MiB, under the VMEM limit ----
    if block_channels is None:
        tci = _pick_block_channels(inC, mult, H, W,
                                   x.dtype.itemsize, x.dtype.itemsize,
                                   budget_bytes=12 * 1024 * 1024)
    else:
        assert inC % block_channels == 0
        tci = block_channels
    tco = tci * mult
    nco = outC // tco

    # Pre-broadcast weights/shift along W (tiny arrays): per-channel scalars
    # become lane slabs -> only native sublane broadcasts inside the kernel.
    w_b = jnp.broadcast_to(w_eff.reshape(outC, 9, 1),
                           (outC, 9, W)).reshape(nco, tco, 9, W)
    b_b = jnp.broadcast_to(shift.reshape(outC, 1),
                           (outC, W)).reshape(nco, tco, W)

    cost = pl.CostEstimate(
        flops=20 * N * outC * H * W,
        transcendentals=0,
        bytes_accessed=(N * inC * H * W + N * outC * H * W) * x.dtype.itemsize
        + (w_b.size + b_b.size) * 4,
    )

    # Grid = (channel-blocks, batch); batch is the fastest axis so the weight /
    # shift blocks keep the same block index across consecutive steps and are
    # only DMA'd nco times total (weight-stationary).
    out = pl.pallas_call(
        _dwconv_bn_relu_kernel,
        out_shape=jax.ShapeDtypeStruct((N, outC, H, W), x.dtype),
        grid_spec=pltpu.PrefetchScalarGridSpec(
            num_scalar_prefetch=0,
            grid=(nco, N),
            in_specs=[
                pl.BlockSpec((1, tci, H, W), lambda c, n: (n, c, 0, 0)),
                pl.BlockSpec((1, tco, 9, W), lambda c, n: (c, 0, 0, 0)),
                pl.BlockSpec((1, tco, W), lambda c, n: (c, 0, 0)),
            ],
            out_specs=pl.BlockSpec((1, tco, H, W), lambda c, n: (n, c, 0, 0)),
            scratch_shapes=[pltpu.VMEM((1, tco, H + 2, W + 2), jnp.float32)],
        ),
        compiler_params=pltpu.CompilerParams(
            dimension_semantics=("parallel", "parallel"),
            vmem_limit_bytes=32 * 1024 * 1024,
        ),
        cost_estimate=cost,
    )(x, w_b, b_b)
    return out


def _reference(x_nchw, conv_w, gamma, beta, run_mean, run_var, eps=1e-5):
    """Pure-JAX reference (lax grouped conv + inference BN + ReLU)."""
    inC = x_nchw.shape[1]
    y = jax.lax.conv_general_dilated(
        x_nchw.astype(jnp.float32), conv_w.astype(jnp.float32),
        window_strides=(1, 1), padding=((1, 1), (1, 1)),
        dimension_numbers=("NCHW", "OIHW", "NCHW"),
        feature_group_count=inC)
    inv_std = 1.0 / jnp.sqrt(run_var + eps)
    y = (y - run_mean[None, :, None, None]) * (gamma * inv_std)[None, :, None, None] \
        + beta[None, :, None, None]
    return jnp.maximum(y, 0.0)


if __name__ == "__main__":
    key = jax.random.PRNGKey(0)
    k_x, k_w, k_g, k_b, k_m, k_v = jax.random.split(key, 6)

    N, inC, H, W = 2, 8, 16, 16
    outC = inC  # standard depthwise usage in FastSCNN (m = 1)

    x = jax.random.normal(k_x, (N, inC, H, W), jnp.float32)
    conv_w = jax.random.normal(k_w, (outC, 1, 3, 3), jnp.float32) * 0.1
    gamma = 1.0 + 0.1 * jax.random.normal(k_g, (outC,), jnp.float32)
    beta = 0.1 * jax.random.normal(k_b, (outC,), jnp.float32)
    run_mean = 0.05 * jax.random.normal(k_m, (outC,), jnp.float32)
    run_var = jnp.abs(jax.random.normal(k_v, (outC,), jnp.float32)) + 0.5

    ref = _reference(x, conv_w, gamma, beta, run_mean, run_var)

    # auto-chosen channel block (fits in one block at this toy size)
    out = dwconv_bn_relu(x, conv_w, gamma, beta, run_mean, run_var)
    out = jax.block_until_ready(out)
    assert out.shape == (N, outC, H, W)
    assert jnp.allclose(out, ref, atol=1e-4, rtol=1e-4)

    # explicitly exercise the channel-tiled path: grid = (outC // 4, N)
    out_tiled = dwconv_bn_relu(x, conv_w, gamma, beta, run_mean, run_var,
                               block_channels=4)
    out_tiled = jax.block_until_ready(out_tiled)
    assert jnp.allclose(out_tiled, ref, atol=1e-4, rtol=1e-4)

    print("KERNEL_OK")
</pallas_src>

<mosaic_0001>
module attributes {stable_mosaic.version = 11 : i64} {
  func.func @_dwconv_bn_relu_kernel(%arg0: i32, %arg1: i32, %arg2: memref<1x8x16x16xf32, #tpu.memory_space<vmem>>, %arg3: memref<1x8x9x16xf32, #tpu.memory_space<vmem>>, %arg4: memref<1x8x16xf32, #tpu.memory_space<vmem>>, %arg5: memref<1x8x16x16xf32, #tpu.memory_space<vmem>>, %arg6: memref<1x8x18x18xf32, #tpu.memory_space<vmem>>) attributes {dimension_semantics = [#tpu.dimension_semantics<parallel>, #tpu.dimension_semantics<parallel>], iteration_bounds = array<i64: 1, 2>, scalar_prefetch = 0 : i64, scratch_operands = 1 : i64, tpu.core_type = #tpu.core_type<tc>, window_params = [{transform_indices = @transform_0, window_bounds = array<i64: 1, 8, 16, 16>}, {transform_indices = @transform_1, window_bounds = array<i64: 1, 8, 9, 16>}, {transform_indices = @transform_2, window_bounds = array<i64: 1, 8, 16>}, {transform_indices = @transform_3, window_bounds = array<i64: 1, 8, 16, 16>}]} {
    %cst = arith.constant 0.000000e+00 : f32
    %0 = vector.broadcast %cst : f32 to vector<1x8x1x18xf32>
    %cst_0 = arith.constant 0.000000e+00 : f32
    %1 = vector.broadcast %cst_0 : f32 to vector<1x8x18x1xf32>
    %c0 = arith.constant 0 : index
    %c0_1 = arith.constant 0 : index
    %c0_2 = arith.constant 0 : index
    %c0_3 = arith.constant 0 : index
    %2 = vector.load %arg6[%c0, %c0_1, %c0_2, %c0_3] : memref<1x8x18x18xf32, #tpu.memory_space<vmem>>, vector<1x8x1x18xf32>
    tpu.vector_store %arg6[%c0, %c0_1, %c0_2, %c0_3], %0 {strides = array<i32>} : memref<1x8x18x18xf32, #tpu.memory_space<vmem>>, vector<1x8x1x18xf32>,
    %c0_4 = arith.constant 0 : index
    %c0_5 = arith.constant 0 : index
    %c17 = arith.constant 17 : index
    %c0_6 = arith.constant 0 : index
    %3 = vector.load %arg6[%c0_4, %c0_5, %c17, %c0_6] : memref<1x8x18x18xf32, #tpu.memory_space<vmem>>, vector<1x8x1x18xf32>
    tpu.vector_store %arg6[%c0_4, %c0_5, %c17, %c0_6], %0 {strides = array<i32>} : memref<1x8x18x18xf32, #tpu.memory_space<vmem>>, vector<1x8x1x18xf32>,
    %c0_7 = arith.constant 0 : index
    %c0_8 = arith.constant 0 : index
    %c0_9 = arith.constant 0 : index
    %c0_10 = arith.constant 0 : index
    %4 = vector.load %arg6[%c0_7, %c0_8, %c0_9, %c0_10] : memref<1x8x18x18xf32, #tpu.memory_space<vmem>>, vector<1x8x18x1xf32>
    tpu.vector_store %arg6[%c0_7, %c0_8, %c0_9, %c0_10], %1 {strides = array<i32>} : memref<1x8x18x18xf32, #tpu.memory_space<vmem>>, vector<1x8x18x1xf32>,
    %c0_11 = arith.constant 0 : index
    %c0_12 = arith.constant 0 : index
    %c0_13 = arith.constant 0 : index
    %c17_14 = arith.constant 17 : index
    %5 = vector.load %arg6[%c0_11, %c0_12, %c0_13, %c17_14] : memref<1x8x18x18xf32, #tpu.memory_space<vmem>>, vector<1x8x18x1xf32>
    tpu.vector_store %arg6[%c0_11, %c0_12, %c0_13, %c17_14], %1 {strides = array<i32>} : memref<1x8x18x18xf32, #tpu.memory_space<vmem>>, vector<1x8x18x1xf32>,
    %c0_15 = arith.constant 0 : index
    %c0_16 = arith.constant 0 : index
    %c0_17 = arith.constant 0 : index
    %c0_18 = arith.constant 0 : index
    %6 = vector.load %arg2[%c0_15, %c0_16, %c0_17, %c0_18] : memref<1x8x16x16xf32, #tpu.memory_space<vmem>>, vector<1x8x16x16xf32>
    %c0_19 = arith.constant 0 : index
    %c0_20 = arith.constant 0 : index
    %c1 = arith.constant 1 : index
    %c1_21 = arith.constant 1 : index
    %7 = vector.load %arg6[%c0_19, %c0_20, %c1, %c1_21] : memref<1x8x18x18xf32, #tpu.memory_space<vmem>>, vector<1x8x16x16xf32>
    tpu.vector_store %arg6[%c0_19, %c0_20, %c1, %c1_21], %6 {strides = array<i32>} : memref<1x8x18x18xf32, #tpu.memory_space<vmem>>, vector<1x8x16x16xf32>,
    %c0_22 = arith.constant 0 : index
    %c0_23 = arith.constant 0 : index
    %c0_24 = arith.constant 0 : index
    %c0_25 = arith.constant 0 : index
    %8 = vector.load %arg3[%c0_22, %c0_23, %c0_24, %c0_25] : memref<1x8x9x16xf32, #tpu.memory_space<vmem>>, vector<1x8x9x16xf32>
    %c0_26 = arith.constant 0 : index
    %c0_27 = arith.constant 0 : index
    %c0_28 = arith.constant 0 : index
    %9 = vector.load %arg4[%c0_26, %c0_27, %c0_28] : memref<1x8x16xf32, #tpu.memory_space<vmem>>, vector<1x8x16xf32>
    %c0_29 = arith.constant 0 : index
    %c0_30 = arith.constant 0 : index
    %c0_31 = arith.constant 0 : index
    %c0_32 = arith.constant 0 : index
    %10 = vector.load %arg6[%c0_29, %c0_30, %c0_31, %c0_32] : memref<1x8x18x18xf32, #tpu.memory_space<vmem>>, vector<1x8x18x16xf32>
    %c0_33 = arith.constant 0 : index
    %c0_34 = arith.constant 0 : index
    %c0_35 = arith.constant 0 : index
    %c1_36 = arith.constant 1 : index
    %11 = vector.load %arg6[%c0_33, %c0_34, %c0_35, %c1_36] : memref<1x8x18x18xf32, #tpu.memory_space<vmem>>, vector<1x8x18x16xf32>
    %c0_37 = arith.constant 0 : index
    %c0_38 = arith.constant 0 : index
    %c0_39 = arith.constant 0 : index
    %c2 = arith.constant 2 : index
    %12 = vector.load %arg6[%c0_37, %c0_38, %c0_39, %c2] : memref<1x8x18x18xf32, #tpu.memory_space<vmem>>, vector<1x8x18x16xf32>
    %13 = vector.extract_strided_slice %8 {offsets = [0, 0, 0, 0], sizes = [1, 8, 1, 16], strides = [1, 1, 1, 1]} : vector<1x8x9x16xf32> to vector<1x8x1x16xf32>
    %14 = vector.shape_cast %13 : vector<1x8x1x16xf32> to vector<1x8x16xf32>
    %15 = vector.shape_cast %14 : vector<1x8x16xf32> to vector<1x8x1x16xf32>
    %16 = vector.broadcast %15 : vector<1x8x1x16xf32> to vector<1x8x18x16xf32>
    %17 = arith.mulf %10, %16 : vector<1x8x18x16xf32>
    %18 = vector.extract_strided_slice %8 {offsets = [0, 0, 1, 0], sizes = [1, 8, 1, 16], strides = [1, 1, 1, 1]} : vector<1x8x9x16xf32> to vector<1x8x1x16xf32>
    %19 = vector.shape_cast %18 : vector<1x8x1x16xf32> to vector<1x8x16xf32>
    %20 = vector.shape_cast %19 : vector<1x8x16xf32> to vector<1x8x1x16xf32>
    %21 = vector.broadcast %20 : vector<1x8x1x16xf32> to vector<1x8x18x16xf32>
    %22 = arith.mulf %11, %21 : vector<1x8x18x16xf32>
    %23 = arith.addf %17, %22 : vector<1x8x18x16xf32>
    %24 = vector.extract_strided_slice %8 {offsets = [0, 0, 2, 0], sizes = [1, 8, 1, 16], strides = [1, 1, 1, 1]} : vector<1x8x9x16xf32> to vector<1x8x1x16xf32>
    %25 = vector.shape_cast %24 : vector<1x8x1x16xf32> to vector<1x8x16xf32>
    %26 = vector.shape_cast %25 : vector<1x8x16xf32> to vector<1x8x1x16xf32>
    %27 = vector.broadcast %26 : vector<1x8x1x16xf32> to vector<1x8x18x16xf32>
    %28 = arith.mulf %12, %27 : vector<1x8x18x16xf32>
    %29 = arith.addf %23, %28 : vector<1x8x18x16xf32>
    %30 = vector.extract_strided_slice %8 {offsets = [0, 0, 3, 0], sizes = [1, 8, 1, 16], strides = [1, 1, 1, 1]} : vector<1x8x9x16xf32> to vector<1x8x1x16xf32>
    %31 = vector.shape_cast %30 : vector<1x8x1x16xf32> to vector<1x8x16xf32>
    %32 = vector.shape_cast %31 : vector<1x8x16xf32> to vector<1x8x1x16xf32>
    %33 = vector.broadcast %32 : vector<1x8x1x16xf32> to vector<1x8x18x16xf32>
    %34 = arith.mulf %10, %33 : vector<1x8x18x16xf32>
    %35 = vector.extract_strided_slice %8 {offsets = [0, 0, 4, 0], sizes = [1, 8, 1, 16], strides = [1, 1, 1, 1]} : vector<1x8x9x16xf32> to vector<1x8x1x16xf32>
    %36 = vector.shape_cast %35 : vector<1x8x1x16xf32> to vector<1x8x16xf32>
    %37 = vector.shape_cast %36 : vector<1x8x16xf32> to vector<1x8x1x16xf32>
    %38 = vector.broadcast %37 : vector<1x8x1x16xf32> to vector<1x8x18x16xf32>
    %39 = arith.mulf %11, %38 : vector<1x8x18x16xf32>
    %40 = arith.addf %34, %39 : vector<1x8x18x16xf32>
    %41 = vector.extract_strided_slice %8 {offsets = [0, 0, 5, 0], sizes = [1, 8, 1, 16], strides = [1, 1, 1, 1]} : vector<1x8x9x16xf32> to vector<1x8x1x16xf32>
    %42 = vector.shape_cast %41 : vector<1x8x1x16xf32> to vector<1x8x16xf32>
    %43 = vector.shape_cast %42 : vector<1x8x16xf32> to vector<1x8x1x16xf32>
    %44 = vector.broadcast %43 : vector<1x8x1x16xf32> to vector<1x8x18x16xf32>
    %45 = arith.mulf %12, %44 : vector<1x8x18x16xf32>
    %46 = arith.addf %40, %45 : vector<1x8x18x16xf32>
    %47 = vector.extract_strided_slice %8 {offsets = [0, 0, 6, 0], sizes = [1, 8, 1, 16], strides = [1, 1, 1, 1]} : vector<1x8x9x16xf32> to vector<1x8x1x16xf32>
    %48 = vector.shape_cast %47 : vector<1x8x1x16xf32> to vector<1x8x16xf32>
    %49 = vector.shape_cast %48 : vector<1x8x16xf32> to vector<1x8x1x16xf32>
    %50 = vector.broadcast %49 : vector<1x8x1x16xf32> to vector<1x8x18x16xf32>
    %51 = arith.mulf %10, %50 : vector<1x8x18x16xf32>
    %52 = vector.extract_strided_slice %8 {offsets = [0, 0, 7, 0], sizes = [1, 8, 1, 16], strides = [1, 1, 1, 1]} : vector<1x8x9x16xf32> to vector<1x8x1x16xf32>
    %53 = vector.shape_cast %52 : vector<1x8x1x16xf32> to vector<1x8x16xf32>
    %54 = vector.shape_cast %53 : vector<1x8x16xf32> to vector<1x8x1x16xf32>
    %55 = vector.broadcast %54 : vector<1x8x1x16xf32> to vector<1x8x18x16xf32>
    %56 = arith.mulf %11, %55 : vector<1x8x18x16xf32>
    %57 = arith.addf %51, %56 : vector<1x8x18x16xf32>
    %58 = vector.extract_strided_slice %8 {offsets = [0, 0, 8, 0], sizes = [1, 8, 1, 16], strides = [1, 1, 1, 1]} : vector<1x8x9x16xf32> to vector<1x8x1x16xf32>
    %59 = vector.shape_cast %58 : vector<1x8x1x16xf32> to vector<1x8x16xf32>
    %60 = vector.shape_cast %59 : vector<1x8x16xf32> to vector<1x8x1x16xf32>
    %61 = vector.broadcast %60 : vector<1x8x1x16xf32> to vector<1x8x18x16xf32>
    %62 = arith.mulf %12, %61 : vector<1x8x18x16xf32>
    %63 = arith.addf %57, %62 : vector<1x8x18x16xf32>
    %64 = vector.extract_strided_slice %29 {offsets = [0, 0, 0, 0], sizes = [1, 8, 16, 16], strides = [1, 1, 1, 1]} : vector<1x8x18x16xf32> to vector<1x8x16x16xf32>
    %65 = vector.extract_strided_slice %46 {offsets = [0, 0, 1, 0], sizes = [1, 8, 16, 16], strides = [1, 1, 1, 1]} : vector<1x8x18x16xf32> to vector<1x8x16x16xf32>
    %66 = arith.addf %64, %65 : vector<1x8x16x16xf32>
    %67 = vector.extract_strided_slice %63 {offsets = [0, 0, 2, 0], sizes = [1, 8, 16, 16], strides = [1, 1, 1, 1]} : vector<1x8x18x16xf32> to vector<1x8x16x16xf32>
    %68 = arith.addf %66, %67 : vector<1x8x16x16xf32>
    %69 = vector.shape_cast %9 : vector<1x8x16xf32> to vector<1x8x1x16xf32>
    %70 = vector.broadcast %69 : vector<1x8x1x16xf32> to vector<1x8x16x16xf32>
    %71 = arith.addf %68, %70 : vector<1x8x16x16xf32>
    %cst_40 = arith.constant 0.000000e+00 : f32
    %72 = vector.broadcast %cst_40 : f32 to vector<1x8x16x16xf32>
    %73 = arith.maximumf %71, %72 : vector<1x8x16x16xf32>
    %c0_41 = arith.constant 0 : index
    %c0_42 = arith.constant 0 : index
    %c0_43 = arith.constant 0 : index
    %c0_44 = arith.constant 0 : index
    %74 = vector.load %arg5[%c0_41, %c0_42, %c0_43, %c0_44] : memref<1x8x16x16xf32, #tpu.memory_space<vmem>>, vector<1x8x16x16xf32>
    tpu.vector_store %arg5[%c0_41, %c0_42, %c0_43, %c0_44], %73 {strides = array<i32>} : memref<1x8x16x16xf32, #tpu.memory_space<vmem>>, vector<1x8x16x16xf32>,
    return
  }
  func.func @transform_0(%arg0: i32, %arg1: i32) -> (i32, i32, i32, i32) {
    %c0_i32 = arith.constant 0 : i32
    %c0_i32_0 = arith.constant 0 : i32
    %c0_i32_1 = arith.constant 0 : i32
    return %arg1, %arg0, %c0_i32, %c0_i32_0 : i32, i32, i32, i32
  }
  func.func @transform_1(%arg0: i32, %arg1: i32) -> (i32, i32, i32, i32) {
    %c0_i32 = arith.constant 0 : i32
    %c0_i32_0 = arith.constant 0 : i32
    %c0_i32_1 = arith.constant 0 : i32
    %c0_i32_2 = arith.constant 0 : i32
    return %arg0, %c0_i32, %c0_i32_0, %c0_i32_1 : i32, i32, i32, i32
  }
  func.func @transform_2(%arg0: i32, %arg1: i32) -> (i32, i32, i32) {
    %c0_i32 = arith.constant 0 : i32
    %c0_i32_0 = arith.constant 0 : i32
    %c0_i32_1 = arith.constant 0 : i32
    return %arg0, %c0_i32, %c0_i32_0 : i32, i32, i32
  }
  func.func @transform_3(%arg0: i32, %arg1: i32) -> (i32, i32, i32, i32) {
    %c0_i32 = arith.constant 0 : i32
    %c0_i32_0 = arith.constant 0 : i32
    %c0_i32_1 = arith.constant 0 : i32
    return %arg1, %arg0, %c0_i32, %c0_i32_0 : i32, i32, i32, i32
  }
}

</mosaic_0001>

<llo_original>
// kernel: dwconv_bn_relu.1
$region0: #{dwconv_bn_relu.1}
  #allocation0 [shape = 'u32[]', space=smem, size = 0x4, offset = 0x4, fixed_abs, tag = 'smem constant byte address 0x4 - core index']
  #allocation1 [shape = 'u32[144,128]{1,0:T(1,128)}', space=vmem, size = 0x12000, scoped, tag = 'internal scratch']
  #allocation2 [shape = 'f32[1,8,18,18]{3,2,1,0:T(8,128)}', space=vmem, size = 0x18000, scoped, tag = 'scratch operand']
  %s0 = inlined_call_operand.vmem [shape: f32[2,8,16,16], index: 0, kind: input, shape index: {}]
  %s1 = inlined_call_operand.vmem [shape: f32[1,8,9,16], index: 1, kind: input, shape index: {}]
  %s2 = inlined_call_operand.vmem [shape: f32[1,8,16], index: 2, kind: input, shape index: {}]
  %s3 = inlined_call_operand.hbm [shape: f32[2,8,16,16], index: 3, kind: output, shape index: {}]
  %s4 = sld [smem:[#allocation0]]
  $region45: #{dwconv_bn_relu.1} parent=0
    _
  %s6 = ssub.s32 1, %s4
  %s7 = scalar_select 0, %s6, %s4
  $region1: #{dwconv_bn_relu.1} parent=0
    #allocation3 [shape = 'u8[131072]{0}', space=vmem, size = 0x20000, scoped, tag = 'output window, operand 0']
    #allocation4 [shape = 's32[2]{0}', space=sflag, size = 0x8, scoped, tag = 'scoped memory for dwconv_bn_relu.1']
    %8 = vsyncpa [#allocation4], 0
    %s9 = scalar_lea.sflag [#allocation4], 1
    %10 = vsyncpa %s9, 0
    loop: start=0, step=1, limit=4
    $region2: #{dwconv_bn_relu.1} parent=1 // loop_pre_header
      _
    $region3: #{dwconv_bn_relu.1} parent=1 // loop_header
      %s12 = sphi 0, %s16
      %p13 = scmp.ge.s32.totalorder %s12, 4
      %s19 = sphi 0, %s31
      %s20 = sphi 0, %s27
      %s21 = sphi 0, %s19
      %s22 = sphi 0, %s20
      %s23 = sphi 0, %s21
      %s24 = sphi 0, %s22
      %s36 = sphi 0, %s38
      %s39 = sphi 0, %s36
      %s40 = sphi 0, %s39
      %s56 = sphi 0, %s40
      %s62 = sphi 0, %s64
      %s65 = sphi 0, %s62
      %s66 = sphi 0, %s65
      %s82 = sphi 0, %s66
      %s88 = sphi 0, %s90
      %s91 = sphi 0, %s88
      %s92 = sphi 0, %s91
      %s108 = sphi 0, %s92
      %s116 = sphi 0, %s118
      %s119 = sphi 0, %s116
      %s120 = sphi 0, %s119
      %s136 = sphi 0, %s120
    $region4: #{dwconv_bn_relu.1} parent=1 // loop_header_branch
      %15 = sbr.rel (%p13) target = $region8
    $region5: #{dwconv_bn_relu.1} parent=1 // loop_body
      %s17 = ssub.s32 %s12, 1
      %s18 = ssub.s32 %s12, 2
      %s25 = sadd.s32 1, %s20
      %p26 = scmp.ge.s32.totalorder %s25, 2
      %s27 = scalar_select %p26, 0, %s25
      %s28 = sadd.s32 1, %s19
      %s29 = scalar_select %p26, %s28, %s19
      %p30 = scmp.ge.s32.totalorder %s29, 1
      %s31 = scalar_select %p30, 0, %s29
      %s32 = ssub.s32 %s20, %s27
      %s33 = ssub.s32 %s19, %s31
      %s34 = sor.u32 %s32, %s33
      %p35 = scmp.eq.s32.totalorder %s34, 0
      %s37 = sadd.s32 %s36, 1
      %s38 = scalar_select %p35, %s36, %s37
      %p41 = pneg %p35
      %p42 = scmp.eq.s32.totalorder %s12, 1
      %p43 = por %p41, %p42
      %p44 = scmp.ne.s32.totalorder %s36, %s39
      %p45 = scmp.eq.s32.totalorder %s12, 0
      %p46 = por %p44, %p45
      %p47 = scmp.ne.s32.totalorder %s36, %s39
      %p48 = scmp.eq.s32.totalorder %s17, 1
      %p49 = por %p47, %p48
      %p50 = scmp.ne.s32.totalorder %s39, %s40
      %p51 = scmp.eq.s32.totalorder %s17, 0
      %p52 = por %p50, %p51
      %p53 = scmp.ne.s32.totalorder %s39, %s40
      %p54 = scmp.eq.s32.totalorder %s18, 1
      %p55 = por %p53, %p54
      %p57 = scmp.ne.s32.totalorder %s40, %s56
      %p58 = scmp.eq.s32.totalorder %s18, 0
      %p59 = por %p57, %p58
      %s60 = ssub.s32 %s19, %s31
      %p61 = scmp.eq.s32.totalorder %s60, 0
      %s63 = sadd.s32 %s62, 1
      %s64 = scalar_select %p61, %s62, %s63
      %p67 = pneg %p61
      %p68 = scmp.eq.s32.totalorder %s12, 1
      %p69 = por %p67, %p68
      %p70 = scmp.ne.s32.totalorder %s62, %s65
      %p71 = scmp.eq.s32.totalorder %s12, 0
      %p72 = por %p70, %p71
      %p73 = scmp.ne.s32.totalorder %s62, %s65
      %p74 = scmp.eq.s32.totalorder %s17, 1
      %p75 = por %p73, %p74
      %p76 = scmp.ne.s32.totalorder %s65, %s66
      %p77 = scmp.eq.s32.totalorder %s17, 0
      %p78 = por %p76, %p77
      %p79 = scmp.ne.s32.totalorder %s65, %s66
      %p80 = scmp.eq.s32.totalorder %s18, 1
      %p81 = por %p79, %p80
      %p83 = scmp.ne.s32.totalorder %s66, %s82
      %p84 = scmp.eq.s32.totalorder %s18, 0
      %p85 = por %p83, %p84
      %s86 = ssub.s32 %s19, %s31
      %p87 = scmp.eq.s32.totalorder %s86, 0
      %s89 = sadd.s32 %s88, 1
      %s90 = scalar_select %p87, %s88, %s89
      %p93 = pneg %p87
      %p94 = scmp.eq.s32.totalorder %s12, 1
      %p95 = por %p93, %p94
      %p96 = scmp.ne.s32.totalorder %s88, %s91
      %p97 = scmp.eq.s32.totalorder %s12, 0
      %p98 = por %p96, %p97
      %p99 = scmp.ne.s32.totalorder %s88, %s91
      %p100 = scmp.eq.s32.totalorder %s17, 1
      %p101 = por %p99, %p100
      %p102 = scmp.ne.s32.totalorder %s91, %s92
      %p103 = scmp.eq.s32.totalorder %s17, 0
      %p104 = por %p102, %p103
      %p105 = scmp.ne.s32.totalorder %s91, %s92
      %p106 = scmp.eq.s32.totalorder %s18, 1
      %p107 = por %p105, %p106
      %p109 = scmp.ne.s32.totalorder %s92, %s108
      %p110 = scmp.eq.s32.totalorder %s18, 0
      %p111 = por %p109, %p110
      %s112 = ssub.s32 %s20, %s27
      %s113 = ssub.s32 %s19, %s31
      %s114 = sor.u32 %s112, %s113
      %p115 = scmp.eq.s32.totalorder %s114, 0
      %s117 = sadd.s32 %s116, 1
      %s118 = scalar_select %p115, %s116, %s117
      %p121 = pneg %p115
      %p122 = scmp.eq.s32.totalorder %s12, 1
      %p123 = por %p121, %p122
      %p124 = scmp.ne.s32.totalorder %s116, %s119
      %p125 = scmp.eq.s32.totalorder %s12, 0
      %p126 = por %p124, %p125
      %p127 = scmp.ne.s32.totalorder %s116, %s119
      %p128 = scmp.eq.s32.totalorder %s17, 1
      %p129 = por %p127, %p128
      %p130 = scmp.ne.s32.totalorder %s119, %s120
      %p131 = scmp.eq.s32.totalorder %s17, 0
      %p132 = por %p130, %p131
      %p133 = scmp.ne.s32.totalorder %s119, %s120
      %p134 = scmp.eq.s32.totalorder %s18, 1
      %p135 = por %p133, %p134
      %p137 = scmp.ne.s32.totalorder %s120, %s136
      %p138 = scmp.eq.s32.totalorder %s18, 0
      %p139 = por %p137, %p138
      %p140 = scmp.le.s32.totalorder 1, %s12
      %p141 = scmp.lt.s32.totalorder %s12, 3
      %p142 = pnand %p140, %p141
      %p143 = pneg %p142
      // Predicated region
      $region9: #{dwconv_bn_relu.1} parent=5 // pred_check
        _
      $region10: #{dwconv_bn_relu.1} parent=5 // pred_check_branch
        %145 = sbr.rel (%p142) target = $region12
      $region11: #{dwconv_bn_relu.1} parent=5 // pred_region
        %s146 = ssub.s32 %s12, 1
        // Predicated region
        $region13: #{dwconv_bn_relu.1} parent=11 // pred_check
          %p147 = pneg %p78
        $region14: #{dwconv_bn_relu.1} parent=11 // pred_check_branch
          %149 = sbr.rel (%p147) target = $region16
        $region15: #{dwconv_bn_relu.1} parent=11 // pred_region
          %p150 = scmp.lt.s32.totalorder %s21, 0
          %s151 = scalar_select %p150, %s21, 0
          %s152 = smul.addr %s151, 16
          %s153 = smul.addr %s152, 8
          %s154 = scalar_lea.vmem %s1, %s153
        $region16: #{dwconv_bn_relu.1} parent=11 // pred_fallthru
          _
        // Predicated region
        $region17: #{dwconv_bn_relu.1} parent=11 // pred_check
          %p155 = pneg %p104
        $region18: #{dwconv_bn_relu.1} parent=11 // pred_check_branch
          %157 = sbr.rel (%p155) target = $region20
        $region19: #{dwconv_bn_relu.1} parent=11 // pred_region
          %p158 = scmp.lt.s32.totalorder %s21, 0
          %s159 = scalar_select %p158, %s21, 0
          %s160 = smul.addr %s159, 8
          %s161 = scalar_lea.vmem %s2, %s160
        $region20: #{dwconv_bn_relu.1} parent=11 // pred_fallthru
          _
      $region12: #{dwconv_bn_relu.1} parent=5 // pred_fallthru
        _
      %p162 = scmp.lt.s32.totalorder %s12, 2
      // Predicated region
      $region21: #{dwconv_bn_relu.1} parent=5 // pred_check
        %p163 = pneg %p162
      $region22: #{dwconv_bn_relu.1} parent=5 // pred_check_branch
        %165 = sbr.rel (%p163) target = $region24
      $region23: #{dwconv_bn_relu.1} parent=5 // pred_region
        // Predicated region
        $region25: #{dwconv_bn_relu.1} parent=23 // pred_check
          %p166 = pneg %p46
        $region26: #{dwconv_bn_relu.1} parent=23 // pred_check_branch
          %168 = sbr.rel (%p166) target = $region28
        $region27: #{dwconv_bn_relu.1} parent=23 // pred_region
          %s169 = smul.u32 8, %s19
          %p170 = scmp.lt.s32.totalorder %s20, 1
          %s171 = scalar_select %p170, %s20, 1
          %p172 = scmp.lt.s32.totalorder %s169, 7
          %s173 = scalar_select %p172, %s169, 7
          %s174 = smul.addr %s173, 2
          %s175 = smul.addr %s171, 16
          %s176 = sadd.s32 %s174, %s175
          %s177 = smul.addr %s176, 8
          %s178 = scalar_lea.vmem %s0, %s177
          %s179 = smul.u32 8, %s19
        $region28: #{dwconv_bn_relu.1} parent=23 // pred_fallthru
          _
      $region24: #{dwconv_bn_relu.1} parent=5 // pred_fallthru
        _
      %p180 = scmp.le.s32.totalorder 1, %s12
      %p181 = scmp.lt.s32.totalorder %s12, 3
      %p182 = pnand %p180, %p181
      %p183 = pneg %p182
      // Predicated region
      $region29: #{dwconv_bn_relu.1} parent=5 // pred_check
        _
      $region30: #{dwconv_bn_relu.1} parent=5 // pred_check_branch
        %185 = sbr.rel (%p182) target = $region32
      $region31: #{dwconv_bn_relu.1} parent=5 // pred_region
        %s186 = ssub.s32 %s12, 1
        %s187 = smul.u32 8, %s21
        %p188 = scmp.lt.s32.totalorder %s22, 1
        %s189 = scalar_select %p188, %s22, 1
        %p190 = scmp.lt.s32.totalorder %s187, 7
        %s191 = scalar_select %p190, %s187, 7
        %s192 = smul.addr %s191, 2
        %s193 = smul.addr %s189, 16
        %s194 = sadd.s32 %s192, %s193
        %s195 = smul.addr %s194, 8
        %s196 = scalar_lea.vmem %s0, %s195
        %p197 = pneg %p52
        %p198 = pneg %p49
        %p199 = scmp.lt.s32.totalorder %s21, 0
        %s200 = scalar_select %p199, %s21, 0
        %s201 = smul.addr %s200, 16
        %s202 = smul.addr %s201, 8
        %s203 = scalar_lea.vmem %s1, %s202
        %p204 = pneg %p78
        %p205 = pneg %p75
        %p206 = scmp.lt.s32.totalorder %s21, 0
        %s207 = scalar_select %p206, %s21, 0
        %s208 = smul.addr %s207, 8
        %s209 = scalar_lea.vmem %s2, %s208
        %p210 = pneg %p104
        %p211 = pneg %p101
        %p212 = pneg %p132
        %p213 = pneg %p129
        %s214 = sand.u32 %s119, 1
        %s215 = scalar_lea.sflag [#allocation4], %s214
        %s216 = sand.u32 %s119, 1
        %s217 = smul.addr %s216, 128
        %s218 = scalar_lea.vmem [#allocation3], %s217
        %s219 = smul.u32 8, %s21
        %p220 = scmp.lt.s32.totalorder %s22, 1
        %s221 = scalar_select %p220, %s22, 1
        %p222 = scmp.lt.s32.totalorder %s219, 7
        %s223 = scalar_select %p222, %s219, 7
        %s224 = smul.addr %s223, 2
        %s225 = smul.addr %s221, 16
        %s226 = sadd.s32 %s224, %s225
        %s227 = smul.addr %s226, 8
        %s228 = scalar_lea.vmem %s0, %s227
        %s229 = smul.u32 8, %s21
        %p230 = scmp.lt.s32.totalorder %s21, 0
        %s231 = scalar_select %p230, %s21, 0
        %s232 = smul.addr %s231, 16
        %s233 = smul.addr %s232, 8
        %s234 = scalar_lea.vmem %s1, %s233
        %p235 = scmp.lt.s32.totalorder %s21, 0
        %s236 = scalar_select %p235, %s21, 0
        %s237 = smul.addr %s236, 8
        %s238 = scalar_lea.vmem %s2, %s237
        %s239 = smul.u32 8, %s21
        %vm240 = vcmask 139264
        %241 = vst.msk [vmem:[#allocation2] sm:$0x1] %vm240, 0.0
        %242 = vst.msk [vmem:[#allocation2 + $0x18] sm:$0x1] %vm240, 0.0
        %243 = vst.msk [vmem:[#allocation2 + $0x30] sm:$0x1] %vm240, 0.0
        %244 = vst.msk [vmem:[#allocation2 + $0x48] sm:$0x1] %vm240, 0.0
        %245 = vst.msk [vmem:[#allocation2 + $0x60] sm:$0x1] %vm240, 0.0
        %246 = vst.msk [vmem:[#allocation2 + $0x78] sm:$0x1] %vm240, 0.0
        %247 = vst.msk [vmem:[#allocation2 + $0x90] sm:$0x1] %vm240, 0.0
        %248 = vst.msk [vmem:[#allocation2 + $0xa8] sm:$0x1] %vm240, 0.0
        %249 = vst.msk [vmem:[#allocation2 + $0x11] sm:$0x1] %vm240, 0.0
        %250 = vst.msk [vmem:[#allocation2 + $0x29] sm:$0x1] %vm240, 0.0
        %251 = vst.msk [vmem:[#allocation2 + $0x41] sm:$0x1] %vm240, 0.0
        %252 = vst.msk [vmem:[#allocation2 + $0x59] sm:$0x1] %vm240, 0.0
        %253 = vst.msk [vmem:[#allocation2 + $0x71] sm:$0x1] %vm240, 0.0
        %254 = vst.msk [vmem:[#allocation2 + $0x89] sm:$0x1] %vm240, 0.0
        %255 = vst.msk [vmem:[#allocation2 + $0xa1] sm:$0x1] %vm240, 0.0
        %256 = vst.msk [vmem:[#allocation2 + $0xb9] sm:$0x1] %vm240, 0.0
        %vm257 = vcmask 7168
        %258 = vst.msk [vmem:[#allocation2] sm:$0xff] %vm257, 0.0
        %259 = vst.msk [vmem:[#allocation2 + $0x8] sm:$0xff] %vm257, 0.0
        %vm260 = vcmask 1024
        %261 = vst.msk [vmem:[#allocation2 + $0x10] sm:$0x3] %vm260, 0.0
        %262 = vst.msk [vmem:[#allocation2 + $0x18] sm:$0xff] %vm257, 0.0
        %263 = vst.msk [vmem:[#allocation2 + $0x20] sm:$0xff] %vm257, 0.0
        %264 = vst.msk [vmem:[#allocation2 + $0x28] sm:$0x3] %vm260, 0.0
        %265 = vst.msk [vmem:[#allocation2 + $0x30] sm:$0xff] %vm257, 0.0
        %266 = vst.msk [vmem:[#allocation2 + $0x38] sm:$0xff] %vm257, 0.0
        %267 = vst.msk [vmem:[#allocation2 + $0x40] sm:$0x3] %vm260, 0.0
        %268 = vst.msk [vmem:[#allocation2 + $0x48] sm:$0xff] %vm257, 0.0
        %269 = vst.msk [vmem:[#allocation2 + $0x50] sm:$0xff] %vm257, 0.0
        %270 = vst.msk [vmem:[#allocation2 + $0x58] sm:$0x3] %vm260, 0.0
        %271 = vst.msk [vmem:[#allocation2 + $0x60] sm:$0xff] %vm257, 0.0
        %272 = vst.msk [vmem:[#allocation2 + $0x68] sm:$0xff] %vm257, 0.0
        %273 = vst.msk [vmem:[#allocation2 + $0x70] sm:$0x3] %vm260, 0.0
        %274 = vst.msk [vmem:[#allocation2 + $0x78] sm:$0xff] %vm257, 0.0
        %275 = vst.msk [vmem:[#allocation2 + $0x80] sm:$0xff] %vm257, 0.0
        %276 = vst.msk [vmem:[#allocation2 + $0x88] sm:$0x3] %vm260, 0.0
        %277 = vst.msk [vmem:[#allocation2 + $0x90] sm:$0xff] %vm257, 0.0
        %278 = vst.msk [vmem:[#allocation2 + $0x98] sm:$0xff] %vm257, 0.0
        %279 = vst.msk [vmem:[#allocation2 + $0xa0] sm:$0x3] %vm260, 0.0
        %280 = vst.msk [vmem:[#allocation2 + $0xa8] sm:$0xff] %vm257, 0.0
        %281 = vst.msk [vmem:[#allocation2 + $0xb0] sm:$0xff] %vm257, 0.0
        %282 = vst.msk [vmem:[#allocation2 + $0xb8] sm:$0x3] %vm260, 0.0
        %vm283 = vcmask 146568
        %284 = vst.msk [vmem:[#allocation2] sm:$0xff] %vm283, 0.0
        %285 = vst.msk [vmem:[#allocation2 + $0x8] sm:$0xff] %vm283, 0.0
        %vm286 = vcmask 140424
        %287 = vst.msk [vmem:[#allocation2 + $0x10] sm:$0x3] %vm286, 0.0
        %288 = vst.msk [vmem:[#allocation2 + $0x18] sm:$0xff] %vm283, 0.0
        %289 = vst.msk [vmem:[#allocation2 + $0x20] sm:$0xff] %vm283, 0.0
        %290 = vst.msk [vmem:[#allocation2 + $0x28] sm:$0x3] %vm286, 0.0
        %291 = vst.msk [vmem:[#allocation2 + $0x30] sm:$0xff] %vm283, 0.0
        %292 = vst.msk [vmem:[#allocation2 + $0x38] sm:$0xff] %vm283, 0.0
        %293 = vst.msk [vmem:[#allocation2 + $0x40] sm:$0x3] %vm286, 0.0
        %294 = vst.msk [vmem:[#allocation2 + $0x48] sm:$0xff] %vm283, 0.0
        %295 = vst.msk [vmem:[#allocation2 + $0x50] sm:$0xff] %vm283, 0.0
        %296 = vst.msk [vmem:[#allocation2 + $0x58] sm:$0x3] %vm286, 0.0
        %297 = vst.msk [vmem:[#allocation2 + $0x60] sm:$0xff] %vm283, 0.0
        %298 = vst.msk [vmem:[#allocation2 + $0x68] sm:$0xff] %vm283, 0.0
        %299 = vst.msk [vmem:[#allocation2 + $0x70] sm:$0x3] %vm286, 0.0
        %300 = vst.msk [vmem:[#allocation2 + $0x78] sm:$0xff] %vm283, 0.0
        %301 = vst.msk [vmem:[#allocation2 + $0x80] sm:$0xff] %vm283, 0.0
        %302 = vst.msk [vmem:[#allocation2 + $0x88] sm:$0x3] %vm286, 0.0
        %303 = vst.msk [vmem:[#allocation2 + $0x90] sm:$0xff] %vm283, 0.0
        %304 = vst.msk [vmem:[#allocation2 + $0x98] sm:$0xff] %vm283, 0.0
        %305 = vst.msk [vmem:[#allocation2 + $0xa0] sm:$0x3] %vm286, 0.0
        %306 = vst.msk [vmem:[#allocation2 + $0xa8] sm:$0xff] %vm283, 0.0
        %307 = vst.msk [vmem:[#allocation2 + $0xb0] sm:$0xff] %vm283, 0.0
        %308 = vst.msk [vmem:[#allocation2 + $0xb8] sm:$0x3] %vm286, 0.0
        %v309 = vld [vmem:[%s228] sm:$0xff]
        %v310 = vld [vmem:[%s228 + $0x8] sm:$0xff]
        %v311 = vld [vmem:[%s228 + $0x10] sm:$0xff]
        %v312 = vld [vmem:[%s228 + $0x18] sm:$0xff]
        %v313 = vld [vmem:[%s228 + $0x20] sm:$0xff]
        %v314 = vld [vmem:[%s228 + $0x28] sm:$0xff]
        %v315 = vld [vmem:[%s228 + $0x30] sm:$0xff]
        %v316 = vld [vmem:[%s228 + $0x38] sm:$0xff]
        %v317 = vld [vmem:[%s228 + $0x40] sm:$0xff]
        %v318 = vld [vmem:[%s228 + $0x48] sm:$0xff]
        %v319 = vld [vmem:[%s228 + $0x50] sm:$0xff]
        %v320 = vld [vmem:[%s228 + $0x58] sm:$0xff]
        %v321 = vld [vmem:[%s228 + $0x60] sm:$0xff]
        %v322 = vld [vmem:[%s228 + $0x68] sm:$0xff]
        %v323 = vld [vmem:[%s228 + $0x70] sm:$0xff]
        %v324 = vld [vmem:[%s228 + $0x78] sm:$0xff]
        %341 = vrot.lane.b32.xlu0 %v309, 1
        %v342 = vpop.permute.xlu0 %341
        %343 = vrot.lane.b32.xlu0 %v310, 1
        %v344 = vpop.permute.xlu0 %343
        %345 = vrot.lane.b32.xlu0 %v311, 1
        %v346 = vpop.permute.xlu0 %345
        %347 = vrot.lane.b32.xlu0 %v312, 1
        %v348 = vpop.permute.xlu0 %347
        %349 = vrot.lane.b32.xlu0 %v313, 1
        %v350 = vpop.permute.xlu0 %349
        %351 = vrot.lane.b32.xlu0 %v314, 1
        %v352 = vpop.permute.xlu0 %351
        %353 = vrot.lane.b32.xlu0 %v315, 1
        %v354 = vpop.permute.xlu0 %353
        %355 = vrot.lane.b32.xlu0 %v316, 1
        %v356 = vpop.permute.xlu0 %355
        %357 = vrot.lane.b32.xlu0 %v317, 1
        %v358 = vpop.permute.xlu0 %357
        %359 = vrot.lane.b32.xlu0 %v318, 1
        %v360 = vpop.permute.xlu0 %359
        %361 = vrot.lane.b32.xlu0 %v319, 1
        %v362 = vpop.permute.xlu0 %361
        %363 = vrot.lane.b32.xlu0 %v320, 1
        %v364 = vpop.permute.xlu0 %363
        %365 = vrot.lane.b32.xlu0 %v321, 1
        %v366 = vpop.permute.xlu0 %365
        %367 = vrot.lane.b32.xlu0 %v322, 1
        %v368 = vpop.permute.xlu0 %367
        %369 = vrot.lane.b32.xlu0 %v323, 1
        %v370 = vpop.permute.xlu0 %369
        %371 = vrot.lane.b32.xlu0 %v324, 1
        %v372 = vpop.permute.xlu0 %371
        %vm389 = vcmask 138248
        %390 = vst.msk [vmem:[#allocation2 + $0x1] sm:$0xff] %vm389, %v342
        %391 = vst.msk [vmem:[#allocation2 + $0x9] sm:$0xff] %vm389, %v344
        %392 = vst.msk [vmem:[#allocation2 + $0x19] sm:$0xff] %vm389, %v346
        %393 = vst.msk [vmem:[#allocation2 + $0x21] sm:$0xff] %vm389, %v348
        %394 = vst.msk [vmem:[#allocation2 + $0x31] sm:$0xff] %vm389, %v350
        %395 = vst.msk [vmem:[#allocation2 + $0x39] sm:$0xff] %vm389, %v352
        %396 = vst.msk [vmem:[#allocation2 + $0x49] sm:$0xff] %vm389, %v354
        %397 = vst.msk [vmem:[#allocation2 + $0x51] sm:$0xff] %vm389, %v356
        %398 = vst.msk [vmem:[#allocation2 + $0x61] sm:$0xff] %vm389, %v358
        %399 = vst.msk [vmem:[#allocation2 + $0x69] sm:$0xff] %vm389, %v360
        %400 = vst.msk [vmem:[#allocation2 + $0x79] sm:$0xff] %vm389, %v362
        %401 = vst.msk [vmem:[#allocation2 + $0x81] sm:$0xff] %vm389, %v364
        %402 = vst.msk [vmem:[#allocation2 + $0x91] sm:$0xff] %vm389, %v366
        %403 = vst.msk [vmem:[#allocation2 + $0x99] sm:$0xff] %vm389, %v368
        %404 = vst.msk [vmem:[#allocation2 + $0xa9] sm:$0xff] %vm389, %v370
        %405 = vst.msk [vmem:[#allocation2 + $0xb1] sm:$0xff] %vm389, %v372
        %v406 = vld [vmem:[%s234] sm:$0xff]
        %v407 = vld [vmem:[%s234 + $0x8] sm:$0x1]
        %v408 = vld [vmem:[%s234 + $0x10] sm:$0xff]
        %v409 = vld [vmem:[%s234 + $0x18] sm:$0x1]
        %v410 = vld [vmem:[%s234 + $0x20] sm:$0xff]
        %v411 = vld [vmem:[%s234 + $0x28] sm:$0x1]
        %v412 = vld [vmem:[%s234 + $0x30] sm:$0xff]
        %v413 = vld [vmem:[%s234 + $0x38] sm:$0x1]
        %v414 = vld [vmem:[%s234 + $0x40] sm:$0xff]
        %v415 = vld [vmem:[%s234 + $0x48] sm:$0x1]
        %v416 = vld [vmem:[%s234 + $0x50] sm:$0xff]
        %v417 = vld [vmem:[%s234 + $0x58] sm:$0x1]
        %v418 = vld [vmem:[%s234 + $0x60] sm:$0xff]
        %v419 = vld [vmem:[%s234 + $0x68] sm:$0x1]
        %v420 = vld [vmem:[%s234 + $0x70] sm:$0xff]
        %v421 = vld [vmem:[%s234 + $0x78] sm:$0x1]
        %v422 = vld [vmem:[%s238] sm:$0xff]
        %v423 = vld [vmem:[#allocation2] sm:$0xff]
        %v424 = vld [vmem:[#allocation2 + $0x8] sm:$0xff]
        %v425 = vld [vmem:[#allocation2 + $0x10] sm:$0x3]
        %v426 = vld [vmem:[#allocation2 + $0x18] sm:$0xff]
        %v427 = vld [vmem:[#allocation2 + $0x20] sm:$0xff]
        %v428 = vld [vmem:[#allocation2 + $0x28] sm:$0x3]
        %v429 = vld [vmem:[#allocation2 + $0x30] sm:$0xff]
        %v430 = vld [vmem:[#allocation2 + $0x38] sm:$0xff]
        %v431 = vld [vmem:[#allocation2 + $0x40] sm:$0x3]
        %v432 = vld [vmem:[#allocation2 + $0x48] sm:$0xff]
        %v433 = vld [vmem:[#allocation2 + $0x50] sm:$0xff]
        %v434 = vld [vmem:[#allocation2 + $0x58] sm:$0x3]
        %v435 = vld [vmem:[#allocation2 + $0x60] sm:$0xff]
        %v436 = vld [vmem:[#allocation2 + $0x68] sm:$0xff]
        %v437 = vld [vmem:[#allocation2 + $0x70] sm:$0x3]
        %v438 = vld [vmem:[#allocation2 + $0x78] sm:$0xff]
        %v439 = vld [vmem:[#allocation2 + $0x80] sm:$0xff]
        %v440 = vld [vmem:[#allocation2 + $0x88] sm:$0x3]
        %v441 = vld [vmem:[#allocation2 + $0x90] sm:$0xff]
        %v442 = vld [vmem:[#allocation2 + $0x98] sm:$0xff]
        %v443 = vld [vmem:[#allocation2 + $0xa0] sm:$0x3]
        %v444 = vld [vmem:[#allocation2 + $0xa8] sm:$0xff]
        %v445 = vld [vmem:[#allocation2 + $0xb0] sm:$0xff]
        %v446 = vld [vmem:[#allocation2 + $0xb8] sm:$0x3]
        %v447 = vlaneseq
        %v448 = vshrl.u32 %v447, 7
        %v449 = vsub.s32 0, %v448
        %v450 = vrot.slane %v406, %v449
        %v451 = vlaneseq
        %v452 = vshrl.u32 %v451, 7
        %v453 = vsub.s32 0, %v452
        %v454 = vrot.slane %v408, %v453
        %v455 = vlaneseq
        %v456 = vshrl.u32 %v455, 7
        %v457 = vsub.s32 0, %v456
        %v458 = vrot.slane %v410, %v457
        %v459 = vlaneseq
        %v460 = vshrl.u32 %v459, 7
        %v461 = vsub.s32 0, %v460
        %v462 = vrot.slane %v412, %v461
        %v463 = vlaneseq
        %v464 = vshrl.u32 %v463, 7
        %v465 = vsub.s32 0, %v464
        %v466 = vrot.slane %v414, %v465
        %v467 = vlaneseq
        %v468 = vshrl.u32 %v467, 7
        %v469 = vsub.s32 0, %v468
        %v470 = vrot.slane %v416, %v469
        %v471 = vlaneseq
        %v472 = vshrl.u32 %v471, 7
        %v473 = vsub.s32 0, %v472
        %v474 = vrot.slane %v418, %v473
        %v475 = vlaneseq
        %v476 = vshrl.u32 %v475, 7
        %v477 = vsub.s32 0, %v476
        %v478 = vrot.slane %v420, %v477
        %v479 = vmul.f32 %v423, %v450
        %v480 = vmul.f32 %v424, %v450
        %v481 = vmul.f32 %v426, %v454
        %v482 = vmul.f32 %v427, %v454
        %v483 = vmul.f32 %v429, %v458
        %v484 = vmul.f32 %v430, %v458
        %v485 = vmul.f32 %v432, %v462
        %v486 = vmul.f32 %v433, %v462
        %v487 = vmul.f32 %v435, %v466
        %v488 = vmul.f32 %v436, %v466
        %v489 = vmul.f32 %v438, %v470
        %v490 = vmul.f32 %v439, %v470
        %v491 = vmul.f32 %v441, %v474
        %v492 = vmul.f32 %v442, %v474
        %v493 = vmul.f32 %v444, %v478
        %v494 = vmul.f32 %v445, %v478
        %v495 = vlaneseq
        %v496 = vshrl.u32 %v495, 7
        %v497 = vsub.s32 1, %v496
        %v498 = vrot.slane %v406, %v497
        %v499 = vlaneseq
        %v500 = vshrl.u32 %v499, 7
        %v501 = vsub.s32 1, %v500
        %v502 = vrot.slane %v408, %v501
        %v503 = vlaneseq
        %v504 = vshrl.u32 %v503, 7
        %v505 = vsub.s32 1, %v504
        %v506 = vrot.slane %v410, %v505
        %v507 = vlaneseq
        %v508 = vshrl.u32 %v507, 7
        %v509 = vsub.s32 1, %v508
        %v510 = vrot.slane %v412, %v509
        %v511 = vlaneseq
        %v512 = vshrl.u32 %v511, 7
        %v513 = vsub.s32 1, %v512
        %v514 = vrot.slane %v414, %v513
        %v515 = vlaneseq
        %v516 = vshrl.u32 %v515, 7
        %v517 = vsub.s32 1, %v516
        %v518 = vrot.slane %v416, %v517
        %v519 = vlaneseq
        %v520 = vshrl.u32 %v519, 7
        %v521 = vsub.s32 1, %v520
        %v522 = vrot.slane %v418, %v521
        %v523 = vlaneseq
        %v524 = vshrl.u32 %v523, 7
        %v525 = vsub.s32 1, %v524
        %v526 = vrot.slane %v420, %v525
        %535 = vrot.lane.b32.xlu0 %v498, 1
        %v536 = vpop.permute.xlu0 %535
        %537 = vrot.lane.b32.xlu0 %v502, 1
        %v538 = vpop.permute.xlu0 %537
        %539 = vrot.lane.b32.xlu0 %v506, 1
        %v540 = vpop.permute.xlu0 %539
        %541 = vrot.lane.b32.xlu0 %v510, 1
        %v542 = vpop.permute.xlu0 %541
        %543 = vrot.lane.b32.xlu0 %v514, 1
        %v544 = vpop.permute.xlu0 %543
        %545 = vrot.lane.b32.xlu0 %v518, 1
        %v546 = vpop.permute.xlu0 %545
        %547 = vrot.lane.b32.xlu0 %v522, 1
        %v548 = vpop.permute.xlu0 %547
        %549 = vrot.lane.b32.xlu0 %v526, 1
        %v550 = vpop.permute.xlu0 %549
        %v559 = vmul.f32 %v423, %v536
        %v560 = vmul.f32 %v424, %v536
        %v561 = vmul.f32 %v426, %v538
        %v562 = vmul.f32 %v427, %v538
        %v563 = vmul.f32 %v429, %v540
        %v564 = vmul.f32 %v430, %v540
        %v565 = vmul.f32 %v432, %v542
        %v566 = vmul.f32 %v433, %v542
        %v567 = vmul.f32 %v435, %v544
        %v568 = vmul.f32 %v436, %v544
        %v569 = vmul.f32 %v438, %v546
        %v570 = vmul.f32 %v439, %v546
        %v571 = vmul.f32 %v441, %v548
        %v572 = vmul.f32 %v442, %v548
        %v573 = vmul.f32 %v444, %v550
        %v574 = vmul.f32 %v445, %v550
        %591 = vrot.lane.b32.xlu0 %v559, 127
        %v592 = vpop.permute.xlu0 %591
        %593 = vrot.lane.b32.xlu0 %v560, 127
        %v594 = vpop.permute.xlu0 %593
        %595 = vrot.lane.b32.xlu0 %v561, 127
        %v596 = vpop.permute.xlu0 %595
        %597 = vrot.lane.b32.xlu0 %v562, 127
        %v598 = vpop.permute.xlu0 %597
        %599 = vrot.lane.b32.xlu0 %v563, 127
        %v600 = vpop.permute.xlu0 %599
        %601 = vrot.lane.b32.xlu0 %v564, 127
        %v602 = vpop.permute.xlu0 %601
        %603 = vrot.lane.b32.xlu0 %v565, 127
        %v604 = vpop.permute.xlu0 %603
        %605 = vrot.lane.b32.xlu0 %v566, 127
        %v606 = vpop.permute.xlu0 %605
        %607 = vrot.lane.b32.xlu0 %v567, 127
        %v608 = vpop.permute.xlu0 %607
        %609 = vrot.lane.b32.xlu0 %v568, 127
        %v610 = vpop.permute.xlu0 %609
        %611 = vrot.lane.b32.xlu0 %v569, 127
        %v612 = vpop.permute.xlu0 %611
        %613 = vrot.lane.b32.xlu0 %v570, 127
        %v614 = vpop.permute.xlu0 %613
        %615 = vrot.lane.b32.xlu0 %v571, 127
        %v616 = vpop.permute.xlu0 %615
        %617 = vrot.lane.b32.xlu0 %v572, 127
        %v618 = vpop.permute.xlu0 %617
        %619 = vrot.lane.b32.xlu0 %v573, 127
        %v620 = vpop.permute.xlu0 %619
        %621 = vrot.lane.b32.xlu0 %v574, 127
        %v622 = vpop.permute.xlu0 %621
        %v639 = vadd.f32 %v479, %v592
        %v640 = vadd.f32 %v480, %v594
        %v641 = vadd.f32 %v481, %v596
        %v642 = vadd.f32 %v482, %v598
        %v643 = vadd.f32 %v483, %v600
        %v644 = vadd.f32 %v484, %v602
        %v645 = vadd.f32 %v485, %v604
        %v646 = vadd.f32 %v486, %v606
        %v647 = vadd.f32 %v487, %v608
        %v648 = vadd.f32 %v488, %v610
        %v649 = vadd.f32 %v489, %v612
        %v650 = vadd.f32 %v490, %v614
        %v651 = vadd.f32 %v491, %v616
        %v652 = vadd.f32 %v492, %v618
        %v653 = vadd.f32 %v493, %v620
        %v654 = vadd.f32 %v494, %v622
        %v655 = vlaneseq
        %v656 = vshrl.u32 %v655, 7
        %v657 = vsub.s32 2, %v656
        %v658 = vrot.slane %v406, %v657
        %v659 = vlaneseq
        %v660 = vshrl.u32 %v659, 7
        %v661 = vsub.s32 2, %v660
        %v662 = vrot.slane %v408, %v661
        %v663 = vlaneseq
        %v664 = vshrl.u32 %v663, 7
        %v665 = vsub.s32 2, %v664
        %v666 = vrot.slane %v410, %v665
        %v667 = vlaneseq
        %v668 = vshrl.u32 %v667, 7
        %v669 = vsub.s32 2, %v668
        %v670 = vrot.slane %v412, %v669
        %v671 = vlaneseq
        %v672 = vshrl.u32 %v671, 7
        %v673 = vsub.s32 2, %v672
        %v674 = vrot.slane %v414, %v673
        %v675 = vlaneseq
        %v676 = vshrl.u32 %v675, 7
        %v677 = vsub.s32 2, %v676
        %v678 = vrot.slane %v416, %v677
        %v679 = vlaneseq
        %v680 = vshrl.u32 %v679, 7
        %v681 = vsub.s32 2, %v680
        %v682 = vrot.slane %v418, %v681
        %v683 = vlaneseq
        %v684 = vshrl.u32 %v683, 7
        %v685 = vsub.s32 2, %v684
        %v686 = vrot.slane %v420, %v685
        %695 = vrot.lane.b32.xlu0 %v658, 2
        %v696 = vpop.permute.xlu0 %695
        %697 = vrot.lane.b32.xlu0 %v662, 2
        %v698 = vpop.permute.xlu0 %697
        %699 = vrot.lane.b32.xlu0 %v666, 2
        %v700 = vpop.permute.xlu0 %699
        %701 = vrot.lane.b32.xlu0 %v670, 2
        %v702 = vpop.permute.xlu0 %701
        %703 = vrot.lane.b32.xlu0 %v674, 2
        %v704 = vpop.permute.xlu0 %703
        %705 = vrot.lane.b32.xlu0 %v678, 2
        %v706 = vpop.permute.xlu0 %705
        %707 = vrot.lane.b32.xlu0 %v682, 2
        %v708 = vpop.permute.xlu0 %707
        %709 = vrot.lane.b32.xlu0 %v686, 2
        %v710 = vpop.permute.xlu0 %709
        %v719 = vmul.f32 %v423, %v696
        %v720 = vmul.f32 %v424, %v696
        %v721 = vmul.f32 %v426, %v698
        %v722 = vmul.f32 %v427, %v698
        %v723 = vmul.f32 %v429, %v700
        %v724 = vmul.f32 %v430, %v700
        %v725 = vmul.f32 %v432, %v702
        %v726 = vmul.f32 %v433, %v702
        %v727 = vmul.f32 %v435, %v704
        %v728 = vmul.f32 %v436, %v704
        %v729 = vmul.f32 %v438, %v706
        %v730 = vmul.f32 %v439, %v706
        %v731 = vmul.f32 %v441, %v708
        %v732 = vmul.f32 %v442, %v708
        %v733 = vmul.f32 %v444, %v710
        %v734 = vmul.f32 %v445, %v710
        %751 = vrot.lane.b32.xlu0 %v719, 126
        %v752 = vpop.permute.xlu0 %751
        %753 = vrot.lane.b32.xlu0 %v720, 126
        %v754 = vpop.permute.xlu0 %753
        %755 = vrot.lane.b32.xlu0 %v721, 126
        %v756 = vpop.permute.xlu0 %755
        %757 = vrot.lane.b32.xlu0 %v722, 126
        %v758 = vpop.permute.xlu0 %757
        %759 = vrot.lane.b32.xlu0 %v723, 126
        %v760 = vpop.permute.xlu0 %759
        %761 = vrot.lane.b32.xlu0 %v724, 126
        %v762 = vpop.permute.xlu0 %761
        %763 = vrot.lane.b32.xlu0 %v725, 126
        %v764 = vpop.permute.xlu0 %763
        %765 = vrot.lane.b32.xlu0 %v726, 126
        %v766 = vpop.permute.xlu0 %765
        %767 = vrot.lane.b32.xlu0 %v727, 126
        %v768 = vpop.permute.xlu0 %767
        %769 = vrot.lane.b32.xlu0 %v728, 126
        %v770 = vpop.permute.xlu0 %769
        %771 = vrot.lane.b32.xlu0 %v729, 126
        %v772 = vpop.permute.xlu0 %771
        %773 = vrot.lane.b32.xlu0 %v730, 126
        %v774 = vpop.permute.xlu0 %773
        %775 = vrot.lane.b32.xlu0 %v731, 126
        %v776 = vpop.permute.xlu0 %775
        %777 = vrot.lane.b32.xlu0 %v732, 126
        %v778 = vpop.permute.xlu0 %777
        %779 = vrot.lane.b32.xlu0 %v733, 126
        %v780 = vpop.permute.xlu0 %779
        %781 = vrot.lane.b32.xlu0 %v734, 126
        %v782 = vpop.permute.xlu0 %781
        %v799 = vadd.f32 %v639, %v752
        %v800 = vadd.f32 %v640, %v754
        %v801 = vadd.f32 %v641, %v756
        %v802 = vadd.f32 %v642, %v758
        %v803 = vadd.f32 %v643, %v760
        %v804 = vadd.f32 %v644, %v762
        %v805 = vadd.f32 %v645, %v764
        %v806 = vadd.f32 %v646, %v766
        %v807 = vadd.f32 %v647, %v768
        %v808 = vadd.f32 %v648, %v770
        %v809 = vadd.f32 %v649, %v772
        %v810 = vadd.f32 %v650, %v774
        %v811 = vadd.f32 %v651, %v776
        %v812 = vadd.f32 %v652, %v778
        %v813 = vadd.f32 %v653, %v780
        %v814 = vadd.f32 %v654, %v782
        %v815 = vlaneseq
        %v816 = vshrl.u32 %v815, 7
        %v817 = vsub.s32 3, %v816
        %v818 = vrot.slane %v406, %v817
        %v819 = vlaneseq
        %v820 = vshrl.u32 %v819, 7
        %v821 = vsub.s32 3, %v820
        %v822 = vrot.slane %v408, %v821
        %v823 = vlaneseq
        %v824 = vshrl.u32 %v823, 7
        %v825 = vsub.s32 3, %v824
        %v826 = vrot.slane %v410, %v825
        %v827 = vlaneseq
        %v828 = vshrl.u32 %v827, 7
        %v829 = vsub.s32 3, %v828
        %v830 = vrot.slane %v412, %v829
        %v831 = vlaneseq
        %v832 = vshrl.u32 %v831, 7
        %v833 = vsub.s32 3, %v832
        %v834 = vrot.slane %v414, %v833
        %v835 = vlaneseq
        %v836 = vshrl.u32 %v835, 7
        %v837 = vsub.s32 3, %v836
        %v838 = vrot.slane %v416, %v837
        %v839 = vlaneseq
        %v840 = vshrl.u32 %v839, 7
        %v841 = vsub.s32 3, %v840
        %v842 = vrot.slane %v418, %v841
        %v843 = vlaneseq
        %v844 = vshrl.u32 %v843, 7
        %v845 = vsub.s32 3, %v844
        %v846 = vrot.slane %v420, %v845
        %v847 = vmul.f32 %v423, %v818
        %v848 = vmul.f32 %v424, %v818
        %v849 = vmul.f32 %v425, %v818
        %v850 = vmul.f32 %v426, %v822
        %v851 = vmul.f32 %v427, %v822
        %v852 = vmul.f32 %v428, %v822
        %v853 = vmul.f32 %v429, %v826
        %v854 = vmul.f32 %v430, %v826
        %v855 = vmul.f32 %v431, %v826
        %v856 = vmul.f32 %v432, %v830
        %v857 = vmul.f32 %v433, %v830
        %v858 = vmul.f32 %v434, %v830
        %v859 = vmul.f32 %v435, %v834
        %v860 = vmul.f32 %v436, %v834
        %v861 = vmul.f32 %v437, %v834
        %v862 = vmul.f32 %v438, %v838
        %v863 = vmul.f32 %v439, %v838
        %v864 = vmul.f32 %v440, %v838
        %v865 = vmul.f32 %v441, %v842
        %v866 = vmul.f32 %v442, %v842
        %v867 = vmul.f32 %v443, %v842
        %v868 = vmul.f32 %v444, %v846
        %v869 = vmul.f32 %v445, %v846
        %v870 = vmul.f32 %v446, %v846
        %v871 = vlaneseq
        %v872 = vshrl.u32 %v871, 7
        %v873 = vsub.s32 4, %v872
        %v874 = vrot.slane %v406, %v873
        %v875 = vlaneseq
        %v876 = vshrl.u32 %v875, 7
        %v877 = vsub.s32 4, %v876
        %v878 = vrot.slane %v408, %v877
        %v879 = vlaneseq
        %v880 = vshrl.u32 %v879, 7
        %v881 = vsub.s32 4, %v880
        %v882 = vrot.slane %v410, %v881
        %v883 = vlaneseq
        %v884 = vshrl.u32 %v883, 7
        %v885 = vsub.s32 4, %v884
        %v886 = vrot.slane %v412, %v885
        %v887 = vlaneseq
        %v888 = vshrl.u32 %v887, 7
        %v889 = vsub.s32 4, %v888
        %v890 = vrot.slane %v414, %v889
        %v891 = vlaneseq
        %v892 = vshrl.u32 %v891, 7
        %v893 = vsub.s32 4, %v892
        %v894 = vrot.slane %v416, %v893
        %v895 = vlaneseq
        %v896 = vshrl.u32 %v895, 7
        %v897 = vsub.s32 4, %v896
        %v898 = vrot.slane %v418, %v897
        %v899 = vlaneseq
        %v900 = vshrl.u32 %v899, 7
        %v901 = vsub.s32 4, %v900
        %v902 = vrot.slane %v420, %v901
        %911 = vrot.lane.b32.xlu0 %v874, 1
        %v912 = vpop.permute.xlu0 %911
        %913 = vrot.lane.b32.xlu0 %v878, 1
        %v914 = vpop.permute.xlu0 %913
        %915 = vrot.lane.b32.xlu0 %v882, 1
        %v916 = vpop.permute.xlu0 %915
        %917 = vrot.lane.b32.xlu0 %v886, 1
        %v918 = vpop.permute.xlu0 %917
        %919 = vrot.lane.b32.xlu0 %v890, 1
        %v920 = vpop.permute.xlu0 %919
        %921 = vrot.lane.b32.xlu0 %v894, 1
        %v922 = vpop.permute.xlu0 %921
        %923 = vrot.lane.b32.xlu0 %v898, 1
        %v924 = vpop.permute.xlu0 %923
        %925 = vrot.lane.b32.xlu0 %v902, 1
        %v926 = vpop.permute.xlu0 %925
        %v935 = vmul.f32 %v423, %v912
        %v936 = vmul.f32 %v424, %v912
        %v937 = vmul.f32 %v425, %v912
        %v938 = vmul.f32 %v426, %v914
        %v939 = vmul.f32 %v427, %v914
        %v940 = vmul.f32 %v428, %v914
        %v941 = vmul.f32 %v429, %v916
        %v942 = vmul.f32 %v430, %v916
        %v943 = vmul.f32 %v431, %v916
        %v944 = vmul.f32 %v432, %v918
        %v945 = vmul.f32 %v433, %v918
        %v946 = vmul.f32 %v434, %v918
        %v947 = vmul.f32 %v435, %v920
        %v948 = vmul.f32 %v436, %v920
        %v949 = vmul.f32 %v437, %v920
        %v950 = vmul.f32 %v438, %v922
        %v951 = vmul.f32 %v439, %v922
        %v952 = vmul.f32 %v440, %v922
        %v953 = vmul.f32 %v441, %v924
        %v954 = vmul.f32 %v442, %v924
        %v955 = vmul.f32 %v443, %v924
        %v956 = vmul.f32 %v444, %v926
        %v957 = vmul.f32 %v445, %v926
        %v958 = vmul.f32 %v446, %v926
        %983 = vrot.lane.b32.xlu0 %v935, 127
        %v984 = vpop.permute.xlu0 %983
        %985 = vrot.lane.b32.xlu0 %v936, 127
        %v986 = vpop.permute.xlu0 %985
        %987 = vrot.lane.b32.xlu0 %v937, 127
        %v988 = vpop.permute.xlu0 %987
        %989 = vrot.lane.b32.xlu0 %v938, 127
        %v990 = vpop.permute.xlu0 %989
        %991 = vrot.lane.b32.xlu0 %v939, 127
        %v992 = vpop.permute.xlu0 %991
        %993 = vrot.lane.b32.xlu0 %v940, 127
        %v994 = vpop.permute.xlu0 %993
        %995 = vrot.lane.b32.xlu0 %v941, 127
        %v996 = vpop.permute.xlu0 %995
        %997 = vrot.lane.b32.xlu0 %v942, 127
        %v998 = vpop.permute.xlu0 %997
        %999 = vrot.lane.b32.xlu0 %v943, 127
        %v1000 = vpop.permute.xlu0 %999
        %1001 = vrot.lane.b32.xlu0 %v944, 127
        %v1002 = vpop.permute.xlu0 %1001
        %1003 = vrot.lane.b32.xlu0 %v945, 127
        %v1004 = vpop.permute.xlu0 %1003
        %1005 = vrot.lane.b32.xlu0 %v946, 127
        %v1006 = vpop.permute.xlu0 %1005
        %1007 = vrot.lane.b32.xlu0 %v947, 127
        %v1008 = vpop.permute.xlu0 %1007
        %1009 = vrot.lane.b32.xlu0 %v948, 127
        %v1010 = vpop.permute.xlu0 %1009
        %1011 = vrot.lane.b32.xlu0 %v949, 127
        %v1012 = vpop.permute.xlu0 %1011
        %1013 = vrot.lane.b32.xlu0 %v950, 127
        %v1014 = vpop.permute.xlu0 %1013
        %1015 = vrot.lane.b32.xlu0 %v951, 127
        %v1016 = vpop.permute.xlu0 %1015
        %1017 = vrot.lane.b32.xlu0 %v952, 127
        %v1018 = vpop.permute.xlu0 %1017
        %1019 = vrot.lane.b32.xlu0 %v953, 127
        %v1020 = vpop.permute.xlu0 %1019
        %1021 = vrot.lane.b32.xlu0 %v954, 127
        %v1022 = vpop.permute.xlu0 %1021
        %1023 = vrot.lane.b32.xlu0 %v955, 127
        %v1024 = vpop.permute.xlu0 %1023
        %1025 = vrot.lane.b32.xlu0 %v956, 127
        %v1026 = vpop.permute.xlu0 %1025
        %1027 = vrot.lane.b32.xlu0 %v957, 127
        %v1028 = vpop.permute.xlu0 %1027
        %1029 = vrot.lane.b32.xlu0 %v958, 127
        %v1030 = vpop.permute.xlu0 %1029
        %v1055 = vadd.f32 %v847, %v984
        %v1056 = vadd.f32 %v848, %v986
        %v1057 = vadd.f32 %v849, %v988
        %v1058 = vadd.f32 %v850, %v990
        %v1059 = vadd.f32 %v851, %v992
        %v1060 = vadd.f32 %v852, %v994
        %v1061 = vadd.f32 %v853, %v996
        %v1062 = vadd.f32 %v854, %v998
        %v1063 = vadd.f32 %v855, %v1000
        %v1064 = vadd.f32 %v856, %v1002
        %v1065 = vadd.f32 %v857, %v1004
        %v1066 = vadd.f32 %v858, %v1006
        %v1067 = vadd.f32 %v859, %v1008
        %v1068 = vadd.f32 %v860, %v1010
        %v1069 = vadd.f32 %v861, %v1012
        %v1070 = vadd.f32 %v862, %v1014
        %v1071 = vadd.f32 %v863, %v1016
        %v1072 = vadd.f32 %v864, %v1018
        %v1073 = vadd.f32 %v865, %v1020
        %v1074 = vadd.f32 %v866, %v1022
        %v1075 = vadd.f32 %v867, %v1024
        %v1076 = vadd.f32 %v868, %v1026
        %v1077 = vadd.f32 %v869, %v1028
        %v1078 = vadd.f32 %v870, %v1030
        %v1079 = vlaneseq
        %v1080 = vshrl.u32 %v1079, 7
        %v1081 = vsub.s32 5, %v1080
        %v1082 = vrot.slane %v406, %v1081
        %v1083 = vlaneseq
        %v1084 = vshrl.u32 %v1083, 7
        %v1085 = vsub.s32 5, %v1084
        %v1086 = vrot.slane %v408, %v1085
        %v1087 = vlaneseq
        %v1088 = vshrl.u32 %v1087, 7
        %v1089 = vsub.s32 5, %v1088
        %v1090 = vrot.slane %v410, %v1089
        %v1091 = vlaneseq
        %v1092 = vshrl.u32 %v1091, 7
        %v1093 = vsub.s32 5, %v1092
        %v1094 = vrot.slane %v412, %v1093
        %v1095 = vlaneseq
        %v1096 = vshrl.u32 %v1095, 7
        %v1097 = vsub.s32 5, %v1096
        %v1098 = vrot.slane %v414, %v1097
        %v1099 = vlaneseq
        %v1100 = vshrl.u32 %v1099, 7
        %v1101 = vsub.s32 5, %v1100
        %v1102 = vrot.slane %v416, %v1101
        %v1103 = vlaneseq
        %v1104 = vshrl.u32 %v1103, 7
        %v1105 = vsub.s32 5, %v1104
        %v1106 = vrot.slane %v418, %v1105
        %v1107 = vlaneseq
        %v1108 = vshrl.u32 %v1107, 7
        %v1109 = vsub.s32 5, %v1108
        %v1110 = vrot.slane %v420, %v1109
        %1119 = vrot.lane.b32.xlu0 %v1082, 2
        %v1120 = vpop.permute.xlu0 %1119
        %1121 = vrot.lane.b32.xlu0 %v1086, 2
        %v1122 = vpop.permute.xlu0 %1121
        %1123 = vrot.lane.b32.xlu0 %v1090, 2
        %v1124 = vpop.permute.xlu0 %1123
        %1125 = vrot.lane.b32.xlu0 %v1094, 2
        %v1126 = vpop.permute.xlu0 %1125
        %1127 = vrot.lane.b32.xlu0 %v1098, 2
        %v1128 = vpop.permute.xlu0 %1127
        %1129 = vrot.lane.b32.xlu0 %v1102, 2
        %v1130 = vpop.permute.xlu0 %1129
        %1131 = vrot.lane.b32.xlu0 %v1106, 2
        %v1132 = vpop.permute.xlu0 %1131
        %1133 = vrot.lane.b32.xlu0 %v1110, 2
        %v1134 = vpop.permute.xlu0 %1133
        %v1143 = vmul.f32 %v423, %v1120
        %v1144 = vmul.f32 %v424, %v1120
        %v1145 = vmul.f32 %v425, %v1120
        %v1146 = vmul.f32 %v426, %v1122
        %v1147 = vmul.f32 %v427, %v1122
        %v1148 = vmul.f32 %v428, %v1122
        %v1149 = vmul.f32 %v429, %v1124
        %v1150 = vmul.f32 %v430, %v1124
        %v1151 = vmul.f32 %v431, %v1124
        %v1152 = vmul.f32 %v432, %v1126
        %v1153 = vmul.f32 %v433, %v1126
        %v1154 = vmul.f32 %v434, %v1126
        %v1155 = vmul.f32 %v435, %v1128
        %v1156 = vmul.f32 %v436, %v1128
        %v1157 = vmul.f32 %v437, %v1128
        %v1158 = vmul.f32 %v438, %v1130
        %v1159 = vmul.f32 %v439, %v1130
        %v1160 = vmul.f32 %v440, %v1130
        %v1161 = vmul.f32 %v441, %v1132
        %v1162 = vmul.f32 %v442, %v1132
        %v1163 = vmul.f32 %v443, %v1132
        %v1164 = vmul.f32 %v444, %v1134
        %v1165 = vmul.f32 %v445, %v1134
        %v1166 = vmul.f32 %v446, %v1134
        %1191 = vrot.lane.b32.xlu0 %v1143, 126
        %v1192 = vpop.permute.xlu0 %1191
        %1193 = vrot.lane.b32.xlu0 %v1144, 126
        %v1194 = vpop.permute.xlu0 %1193
        %1195 = vrot.lane.b32.xlu0 %v1145, 126
        %v1196 = vpop.permute.xlu0 %1195
        %1197 = vrot.lane.b32.xlu0 %v1146, 126
        %v1198 = vpop.permute.xlu0 %1197
        %1199 = vrot.lane.b32.xlu0 %v1147, 126
        %v1200 = vpop.permute.xlu0 %1199
        %1201 = vrot.lane.b32.xlu0 %v1148, 126
        %v1202 = vpop.permute.xlu0 %1201
        %1203 = vrot.lane.b32.xlu0 %v1149, 126
        %v1204 = vpop.permute.xlu0 %1203
        %1205 = vrot.lane.b32.xlu0 %v1150, 126
        %v1206 = vpop.permute.xlu0 %1205
        %1207 = vrot.lane.b32.xlu0 %v1151, 126
        %v1208 = vpop.permute.xlu0 %1207
        %1209 = vrot.lane.b32.xlu0 %v1152, 126
        %v1210 = vpop.permute.xlu0 %1209
        %1211 = vrot.lane.b32.xlu0 %v1153, 126
        %v1212 = vpop.permute.xlu0 %1211
        %1213 = vrot.lane.b32.xlu0 %v1154, 126
        %v1214 = vpop.permute.xlu0 %1213
        %1215 = vrot.lane.b32.xlu0 %v1155, 126
        %v1216 = vpop.permute.xlu0 %1215
        %1217 = vrot.lane.b32.xlu0 %v1156, 126
        %v1218 = vpop.permute.xlu0 %1217
        %1219 = vrot.lane.b32.xlu0 %v1157, 126
        %v1220 = vpop.permute.xlu0 %1219
        %1221 = vrot.lane.b32.xlu0 %v1158, 126
        %v1222 = vpop.permute.xlu0 %1221
        %1223 = vrot.lane.b32.xlu0 %v1159, 126
        %v1224 = vpop.permute.xlu0 %1223
        %1225 = vrot.lane.b32.xlu0 %v1160, 126
        %v1226 = vpop.permute.xlu0 %1225
        %1227 = vrot.lane.b32.xlu0 %v1161, 126
        %v1228 = vpop.permute.xlu0 %1227
        %1229 = vrot.lane.b32.xlu0 %v1162, 126
        %v1230 = vpop.permute.xlu0 %1229
        %1231 = vrot.lane.b32.xlu0 %v1163, 126
        %v1232 = vpop.permute.xlu0 %1231
        %1233 = vrot.lane.b32.xlu0 %v1164, 126
        %v1234 = vpop.permute.xlu0 %1233
        %1235 = vrot.lane.b32.xlu0 %v1165, 126
        %v1236 = vpop.permute.xlu0 %1235
        %1237 = vrot.lane.b32.xlu0 %v1166, 126
        %v1238 = vpop.permute.xlu0 %1237
        %v1263 = vadd.f32 %v1055, %v1192
        %v1264 = vadd.f32 %v1056, %v1194
        %v1265 = vadd.f32 %v1057, %v1196
        %v1266 = vadd.f32 %v1058, %v1198
        %v1267 = vadd.f32 %v1059, %v1200
        %v1268 = vadd.f32 %v1060, %v1202
        %v1269 = vadd.f32 %v1061, %v1204
        %v1270 = vadd.f32 %v1062, %v1206
        %v1271 = vadd.f32 %v1063, %v1208
        %v1272 = vadd.f32 %v1064, %v1210
        %v1273 = vadd.f32 %v1065, %v1212
        %v1274 = vadd.f32 %v1066, %v1214
        %v1275 = vadd.f32 %v1067, %v1216
        %v1276 = vadd.f32 %v1068, %v1218
        %v1277 = vadd.f32 %v1069, %v1220
        %v1278 = vadd.f32 %v1070, %v1222
        %v1279 = vadd.f32 %v1071, %v1224
        %v1280 = vadd.f32 %v1072, %v1226
        %v1281 = vadd.f32 %v1073, %v1228
        %v1282 = vadd.f32 %v1074, %v1230
        %v1283 = vadd.f32 %v1075, %v1232
        %v1284 = vadd.f32 %v1076, %v1234
        %v1285 = vadd.f32 %v1077, %v1236
        %v1286 = vadd.f32 %v1078, %v1238
        %v1287 = vlaneseq
        %v1288 = vshrl.u32 %v1287, 7
        %v1289 = vsub.s32 6, %v1288
        %v1290 = vrot.slane %v406, %v1289
        %v1291 = vlaneseq
        %v1292 = vshrl.u32 %v1291, 7
        %v1293 = vsub.s32 6, %v1292
        %v1294 = vrot.slane %v408, %v1293
        %v1295 = vlaneseq
        %v1296 = vshrl.u32 %v1295, 7
        %v1297 = vsub.s32 6, %v1296
        %v1298 = vrot.slane %v410, %v1297
        %v1299 = vlaneseq
        %v1300 = vshrl.u32 %v1299, 7
        %v1301 = vsub.s32 6, %v1300
        %v1302 = vrot.slane %v412, %v1301
        %v1303 = vlaneseq
        %v1304 = vshrl.u32 %v1303, 7
        %v1305 = vsub.s32 6, %v1304
        %v1306 = vrot.slane %v414, %v1305
        %v1307 = vlaneseq
        %v1308 = vshrl.u32 %v1307, 7
        %v1309 = vsub.s32 6, %v1308
        %v1310 = vrot.slane %v416, %v1309
        %v1311 = vlaneseq
        %v1312 = vshrl.u32 %v1311, 7
        %v1313 = vsub.s32 6, %v1312
        %v1314 = vrot.slane %v418, %v1313
        %v1315 = vlaneseq
        %v1316 = vshrl.u32 %v1315, 7
        %v1317 = vsub.s32 6, %v1316
        %v1318 = vrot.slane %v420, %v1317
        %v1319 = vmul.f32 %v423, %v1290
        %v1320 = vmul.f32 %v424, %v1290
        %v1321 = vmul.f32 %v425, %v1290
        %v1322 = vmul.f32 %v426, %v1294
        %v1323 = vmul.f32 %v427, %v1294
        %v1324 = vmul.f32 %v428, %v1294
        %v1325 = vmul.f32 %v429, %v1298
        %v1326 = vmul.f32 %v430, %v1298
        %v1327 = vmul.f32 %v431, %v1298
        %v1328 = vmul.f32 %v432, %v1302
        %v1329 = vmul.f32 %v433, %v1302
        %v1330 = vmul.f32 %v434, %v1302
        %v1331 = vmul.f32 %v435, %v1306
        %v1332 = vmul.f32 %v436, %v1306
        %v1333 = vmul.f32 %v437, %v1306
        %v1334 = vmul.f32 %v438, %v1310
        %v1335 = vmul.f32 %v439, %v1310
        %v1336 = vmul.f32 %v440, %v1310
        %v1337 = vmul.f32 %v441, %v1314
        %v1338 = vmul.f32 %v442, %v1314
        %v1339 = vmul.f32 %v443, %v1314
        %v1340 = vmul.f32 %v444, %v1318
        %v1341 = vmul.f32 %v445, %v1318
        %v1342 = vmul.f32 %v446, %v1318
        %v1343 = vlaneseq
        %v1344 = vshrl.u32 %v1343, 7
        %v1345 = vsub.s32 7, %v1344
        %v1346 = vrot.slane %v406, %v1345
        %v1347 = vlaneseq
        %v1348 = vshrl.u32 %v1347, 7
        %v1349 = vsub.s32 7, %v1348
        %v1350 = vrot.slane %v408, %v1349
        %v1351 = vlaneseq
        %v1352 = vshrl.u32 %v1351, 7
        %v1353 = vsub.s32 7, %v1352
        %v1354 = vrot.slane %v410, %v1353
        %v1355 = vlaneseq
        %v1356 = vshrl.u32 %v1355, 7
        %v1357 = vsub.s32 7, %v1356
        %v1358 = vrot.slane %v412, %v1357
        %v1359 = vlaneseq
        %v1360 = vshrl.u32 %v1359, 7
        %v1361 = vsub.s32 7, %v1360
        %v1362 = vrot.slane %v414, %v1361
        %v1363 = vlaneseq
        %v1364 = vshrl.u32 %v1363, 7
        %v1365 = vsub.s32 7, %v1364
        %v1366 = vrot.slane %v416, %v1365
        %v1367 = vlaneseq
        %v1368 = vshrl.u32 %v1367, 7
        %v1369 = vsub.s32 7, %v1368
        %v1370 = vrot.slane %v418, %v1369
        %v1371 = vlaneseq
        %v1372 = vshrl.u32 %v1371, 7
        %v1373 = vsub.s32 7, %v1372
        %v1374 = vrot.slane %v420, %v1373
        %1383 = vrot.lane.b32.xlu0 %v1346, 1
        %v1384 = vpop.permute.xlu0 %1383
        %1385 = vrot.lane.b32.xlu0 %v1350, 1
        %v1386 = vpop.permute.xlu0 %1385
        %1387 = vrot.lane.b32.xlu0 %v1354, 1
        %v1388 = vpop.permute.xlu0 %1387
        %1389 = vrot.lane.b32.xlu0 %v1358, 1
        %v1390 = vpop.permute.xlu0 %1389
        %1391 = vrot.lane.b32.xlu0 %v1362, 1
        %v1392 = vpop.permute.xlu0 %1391
        %1393 = vrot.lane.b32.xlu0 %v1366, 1
        %v1394 = vpop.permute.xlu0 %1393
        %1395 = vrot.lane.b32.xlu0 %v1370, 1
        %v1396 = vpop.permute.xlu0 %1395
        %1397 = vrot.lane.b32.xlu0 %v1374, 1
        %v1398 = vpop.permute.xlu0 %1397
        %v1407 = vmul.f32 %v423, %v1384
        %v1408 = vmul.f32 %v424, %v1384
        %v1409 = vmul.f32 %v425, %v1384
        %v1410 = vmul.f32 %v426, %v1386
        %v1411 = vmul.f32 %v427, %v1386
        %v1412 = vmul.f32 %v428, %v1386
        %v1413 = vmul.f32 %v429, %v1388
        %v1414 = vmul.f32 %v430, %v1388
        %v1415 = vmul.f32 %v431, %v1388
        %v1416 = vmul.f32 %v432, %v1390
        %v1417 = vmul.f32 %v433, %v1390
        %v1418 = vmul.f32 %v434, %v1390
        %v1419 = vmul.f32 %v435, %v1392
        %v1420 = vmul.f32 %v436, %v1392
        %v1421 = vmul.f32 %v437, %v1392
        %v1422 = vmul.f32 %v438, %v1394
        %v1423 = vmul.f32 %v439, %v1394
        %v1424 = vmul.f32 %v440, %v1394
        %v1425 = vmul.f32 %v441, %v1396
        %v1426 = vmul.f32 %v442, %v1396
        %v1427 = vmul.f32 %v443, %v1396
        %v1428 = vmul.f32 %v444, %v1398
        %v1429 = vmul.f32 %v445, %v1398
        %v1430 = vmul.f32 %v446, %v1398
        %1455 = vrot.lane.b32.xlu0 %v1407, 127
        %v1456 = vpop.permute.xlu0 %1455
        %1457 = vrot.lane.b32.xlu0 %v1408, 127
        %v1458 = vpop.permute.xlu0 %1457
        %1459 = vrot.lane.b32.xlu0 %v1409, 127
        %v1460 = vpop.permute.xlu0 %1459
        %1461 = vrot.lane.b32.xlu0 %v1410, 127
        %v1462 = vpop.permute.xlu0 %1461
        %1463 = vrot.lane.b32.xlu0 %v1411, 127
        %v1464 = vpop.permute.xlu0 %1463
        %1465 = vrot.lane.b32.xlu0 %v1412, 127
        %v1466 = vpop.permute.xlu0 %1465
        %1467 = vrot.lane.b32.xlu0 %v1413, 127
        %v1468 = vpop.permute.xlu0 %1467
        %1469 = vrot.lane.b32.xlu0 %v1414, 127
        %v1470 = vpop.permute.xlu0 %1469
        %1471 = vrot.lane.b32.xlu0 %v1415, 127
        %v1472 = vpop.permute.xlu0 %1471
        %1473 = vrot.lane.b32.xlu0 %v1416, 127
        %v1474 = vpop.permute.xlu0 %1473
        %1475 = vrot.lane.b32.xlu0 %v1417, 127
        %v1476 = vpop.permute.xlu0 %1475
        %1477 = vrot.lane.b32.xlu0 %v1418, 127
        %v1478 = vpop.permute.xlu0 %1477
        %1479 = vrot.lane.b32.xlu0 %v1419, 127
        %v1480 = vpop.permute.xlu0 %1479
        %1481 = vrot.lane.b32.xlu0 %v1420, 127
        %v1482 = vpop.permute.xlu0 %1481
        %1483 = vrot.lane.b32.xlu0 %v1421, 127
        %v1484 = vpop.permute.xlu0 %1483
        %1485 = vrot.lane.b32.xlu0 %v1422, 127
        %v1486 = vpop.permute.xlu0 %1485
        %1487 = vrot.lane.b32.xlu0 %v1423, 127
        %v1488 = vpop.permute.xlu0 %1487
        %1489 = vrot.lane.b32.xlu0 %v1424, 127
        %v1490 = vpop.permute.xlu0 %1489
        %1491 = vrot.lane.b32.xlu0 %v1425, 127
        %v1492 = vpop.permute.xlu0 %1491
        %1493 = vrot.lane.b32.xlu0 %v1426, 127
        %v1494 = vpop.permute.xlu0 %1493
        %1495 = vrot.lane.b32.xlu0 %v1427, 127
        %v1496 = vpop.permute.xlu0 %1495
        %1497 = vrot.lane.b32.xlu0 %v1428, 127
        %v1498 = vpop.permute.xlu0 %1497
        %1499 = vrot.lane.b32.xlu0 %v1429, 127
        %v1500 = vpop.permute.xlu0 %1499
        %1501 = vrot.lane.b32.xlu0 %v1430, 127
        %v1502 = vpop.permute.xlu0 %1501
        %v1527 = vadd.f32 %v1319, %v1456
        %v1528 = vadd.f32 %v1320, %v1458
        %v1529 = vadd.f32 %v1321, %v1460
        %v1530 = vadd.f32 %v1322, %v1462
        %v1531 = vadd.f32 %v1323, %v1464
        %v1532 = vadd.f32 %v1324, %v1466
        %v1533 = vadd.f32 %v1325, %v1468
        %v1534 = vadd.f32 %v1326, %v1470
        %v1535 = vadd.f32 %v1327, %v1472
        %v1536 = vadd.f32 %v1328, %v1474
        %v1537 = vadd.f32 %v1329, %v1476
        %v1538 = vadd.f32 %v1330, %v1478
        %v1539 = vadd.f32 %v1331, %v1480
        %v1540 = vadd.f32 %v1332, %v1482
        %v1541 = vadd.f32 %v1333, %v1484
        %v1542 = vadd.f32 %v1334, %v1486
        %v1543 = vadd.f32 %v1335, %v1488
        %v1544 = vadd.f32 %v1336, %v1490
        %v1545 = vadd.f32 %v1337, %v1492
        %v1546 = vadd.f32 %v1338, %v1494
        %v1547 = vadd.f32 %v1339, %v1496
        %v1548 = vadd.f32 %v1340, %v1498
        %v1549 = vadd.f32 %v1341, %v1500
        %v1550 = vadd.f32 %v1342, %v1502
        %v1551 = vlaneseq
        %v1552 = vshrl.u32 %v1551, 7
        %v1553 = vsub.s32 0, %v1552
        %v1554 = vrot.slane %v407, %v1553
        %v1555 = vlaneseq
        %v1556 = vshrl.u32 %v1555, 7
        %v1557 = vsub.s32 0, %v1556
        %v1558 = vrot.slane %v409, %v1557
        %v1559 = vlaneseq
        %v1560 = vshrl.u32 %v1559, 7
        %v1561 = vsub.s32 0, %v1560
        %v1562 = vrot.slane %v411, %v1561
        %v1563 = vlaneseq
        %v1564 = vshrl.u32 %v1563, 7
        %v1565 = vsub.s32 0, %v1564
        %v1566 = vrot.slane %v413, %v1565
        %v1567 = vlaneseq
        %v1568 = vshrl.u32 %v1567, 7
        %v1569 = vsub.s32 0, %v1568
        %v1570 = vrot.slane %v415, %v1569
        %v1571 = vlaneseq
        %v1572 = vshrl.u32 %v1571, 7
        %v1573 = vsub.s32 0, %v1572
        %v1574 = vrot.slane %v417, %v1573
        %v1575 = vlaneseq
        %v1576 = vshrl.u32 %v1575, 7
        %v1577 = vsub.s32 0, %v1576
        %v1578 = vrot.slane %v419, %v1577
        %v1579 = vlaneseq
        %v1580 = vshrl.u32 %v1579, 7
        %v1581 = vsub.s32 0, %v1580
        %v1582 = vrot.slane %v421, %v1581
        %1591 = vrot.lane.b32.xlu0 %v1554, 2
        %v1592 = vpop.permute.xlu0 %1591
        %1593 = vrot.lane.b32.xlu0 %v1558, 2
        %v1594 = vpop.permute.xlu0 %1593
        %1595 = vrot.lane.b32.xlu0 %v1562, 2
        %v1596 = vpop.permute.xlu0 %1595
        %1597 = vrot.lane.b32.xlu0 %v1566, 2
        %v1598 = vpop.permute.xlu0 %1597
        %1599 = vrot.lane.b32.xlu0 %v1570, 2
        %v1600 = vpop.permute.xlu0 %1599
        %1601 = vrot.lane.b32.xlu0 %v1574, 2
        %v1602 = vpop.permute.xlu0 %1601
        %1603 = vrot.lane.b32.xlu0 %v1578, 2
        %v1604 = vpop.permute.xlu0 %1603
        %1605 = vrot.lane.b32.xlu0 %v1582, 2
        %v1606 = vpop.permute.xlu0 %1605
        %v1615 = vmul.f32 %v423, %v1592
        %v1616 = vmul.f32 %v424, %v1592
        %v1617 = vmul.f32 %v425, %v1592
        %v1618 = vmul.f32 %v426, %v1594
        %v1619 = vmul.f32 %v427, %v1594
        %v1620 = vmul.f32 %v428, %v1594
        %v1621 = vmul.f32 %v429, %v1596
        %v1622 = vmul.f32 %v430, %v1596
        %v1623 = vmul.f32 %v431, %v1596
        %v1624 = vmul.f32 %v432, %v1598
        %v1625 = vmul.f32 %v433, %v1598
        %v1626 = vmul.f32 %v434, %v1598
        %v1627 = vmul.f32 %v435, %v1600
        %v1628 = vmul.f32 %v436, %v1600
        %v1629 = vmul.f32 %v437, %v1600
        %v1630 = vmul.f32 %v438, %v1602
        %v1631 = vmul.f32 %v439, %v1602
        %v1632 = vmul.f32 %v440, %v1602
        %v1633 = vmul.f32 %v441, %v1604
        %v1634 = vmul.f32 %v442, %v1604
        %v1635 = vmul.f32 %v443, %v1604
        %v1636 = vmul.f32 %v444, %v1606
        %v1637 = vmul.f32 %v445, %v1606
        %v1638 = vmul.f32 %v446, %v1606
        %1663 = vrot.lane.b32.xlu0 %v1615, 126
        %v1664 = vpop.permute.xlu0 %1663
        %1665 = vrot.lane.b32.xlu0 %v1616, 126
        %v1666 = vpop.permute.xlu0 %1665
        %1667 = vrot.lane.b32.xlu0 %v1617, 126
        %v1668 = vpop.permute.xlu0 %1667
        %1669 = vrot.lane.b32.xlu0 %v1618, 126
        %v1670 = vpop.permute.xlu0 %1669
        %1671 = vrot.lane.b32.xlu0 %v1619, 126
        %v1672 = vpop.permute.xlu0 %1671
        %1673 = vrot.lane.b32.xlu0 %v1620, 126
        %v1674 = vpop.permute.xlu0 %1673
        %1675 = vrot.lane.b32.xlu0 %v1621, 126
        %v1676 = vpop.permute.xlu0 %1675
        %1677 = vrot.lane.b32.xlu0 %v1622, 126
        %v1678 = vpop.permute.xlu0 %1677
        %1679 = vrot.lane.b32.xlu0 %v1623, 126
        %v1680 = vpop.permute.xlu0 %1679
        %1681 = vrot.lane.b32.xlu0 %v1624, 126
        %v1682 = vpop.permute.xlu0 %1681
        %1683 = vrot.lane.b32.xlu0 %v1625, 126
        %v1684 = vpop.permute.xlu0 %1683
        %1685 = vrot.lane.b32.xlu0 %v1626, 126
        %v1686 = vpop.permute.xlu0 %1685
        %1687 = vrot.lane.b32.xlu0 %v1627, 126
        %v1688 = vpop.permute.xlu0 %1687
        %1689 = vrot.lane.b32.xlu0 %v1628, 126
        %v1690 = vpop.permute.xlu0 %1689
        %1691 = vrot.lane.b32.xlu0 %v1629, 126
        %v1692 = vpop.permute.xlu0 %1691
        %1693 = vrot.lane.b32.xlu0 %v1630, 126
        %v1694 = vpop.permute.xlu0 %1693
        %1695 = vrot.lane.b32.xlu0 %v1631, 126
        %v1696 = vpop.permute.xlu0 %1695
        %1697 = vrot.lane.b32.xlu0 %v1632, 126
        %v1698 = vpop.permute.xlu0 %1697
        %1699 = vrot.lane.b32.xlu0 %v1633, 126
        %v1700 = vpop.permute.xlu0 %1699
        %1701 = vrot.lane.b32.xlu0 %v1634, 126
        %v1702 = vpop.permute.xlu0 %1701
        %1703 = vrot.lane.b32.xlu0 %v1635, 126
        %v1704 = vpop.permute.xlu0 %1703
        %1705 = vrot.lane.b32.xlu0 %v1636, 126
        %v1706 = vpop.permute.xlu0 %1705
        %1707 = vrot.lane.b32.xlu0 %v1637, 126
        %v1708 = vpop.permute.xlu0 %1707
        %1709 = vrot.lane.b32.xlu0 %v1638, 126
        %v1710 = vpop.permute.xlu0 %1709
        %v1735 = vadd.f32 %v1527, %v1664
        %v1736 = vadd.f32 %v1528, %v1666
        %v1737 = vadd.f32 %v1529, %v1668
        %v1738 = vadd.f32 %v1530, %v1670
        %v1739 = vadd.f32 %v1531, %v1672
        %v1740 = vadd.f32 %v1532, %v1674
        %v1741 = vadd.f32 %v1533, %v1676
        %v1742 = vadd.f32 %v1534, %v1678
        %v1743 = vadd.f32 %v1535, %v1680
        %v1744 = vadd.f32 %v1536, %v1682
        %v1745 = vadd.f32 %v1537, %v1684
        %v1746 = vadd.f32 %v1538, %v1686
        %v1747 = vadd.f32 %v1539, %v1688
        %v1748 = vadd.f32 %v1540, %v1690
        %v1749 = vadd.f32 %v1541, %v1692
        %v1750 = vadd.f32 %v1542, %v1694
        %v1751 = vadd.f32 %v1543, %v1696
        %v1752 = vadd.f32 %v1544, %v1698
        %v1753 = vadd.f32 %v1545, %v1700
        %v1754 = vadd.f32 %v1546, %v1702
        %v1755 = vadd.f32 %v1547, %v1704
        %v1756 = vadd.f32 %v1548, %v1706
        %v1757 = vadd.f32 %v1549, %v1708
        %v1758 = vadd.f32 %v1550, %v1710
        %vm1783 = vcmask 1046528
        %v1784 = vrot.slane %v1263, 1
        %v1785 = vrot.slane %v1264, 1
        %v1786 = vsel %vm1783, %v1784, %v1785
        %v1787 = vrot.slane %v1265, 1
        %v1788 = vsel %vm1783, %v1785, %v1787
        %v1789 = vrot.slane %v1266, 1
        %v1790 = vrot.slane %v1267, 1
        %v1791 = vsel %vm1783, %v1789, %v1790
        %v1792 = vrot.slane %v1268, 1
        %v1793 = vsel %vm1783, %v1790, %v1792
        %v1794 = vrot.slane %v1269, 1
        %v1795 = vrot.slane %v1270, 1
        %v1796 = vsel %vm1783, %v1794, %v1795
        %v1797 = vrot.slane %v1271, 1
        %v1798 = vsel %vm1783, %v1795, %v1797
        %v1799 = vrot.slane %v1272, 1
        %v1800 = vrot.slane %v1273, 1
        %v1801 = vsel %vm1783, %v1799, %v1800
        %v1802 = vrot.slane %v1274, 1
        %v1803 = vsel %vm1783, %v1800, %v1802
        %v1804 = vrot.slane %v1275, 1
        %v1805 = vrot.slane %v1276, 1
        %v1806 = vsel %vm1783, %v1804, %v1805
        %v1807 = vrot.slane %v1277, 1
        %v1808 = vsel %vm1783, %v1805, %v1807
        %v1809 = vrot.slane %v1278, 1
        %v1810 = vrot.slane %v1279, 1
        %v1811 = vsel %vm1783, %v1809, %v1810
        %v1812 = vrot.slane %v1280, 1
        %v1813 = vsel %vm1783, %v1810, %v1812
        %v1814 = vrot.slane %v1281, 1
        %v1815 = vrot.slane %v1282, 1
        %v1816 = vsel %vm1783, %v1814, %v1815
        %v1817 = vrot.slane %v1283, 1
        %v1818 = vsel %vm1783, %v1815, %v1817
        %v1819 = vrot.slane %v1284, 1
        %v1820 = vrot.slane %v1285, 1
        %v1821 = vsel %vm1783, %v1819, %v1820
        %v1822 = vrot.slane %v1286, 1
        %v1823 = vsel %vm1783, %v1820, %v1822
        %v1840 = vadd.f32 %v799, %v1786
        %v1841 = vadd.f32 %v800, %v1788
        %v1842 = vadd.f32 %v801, %v1791
        %v1843 = vadd.f32 %v802, %v1793
        %v1844 = vadd.f32 %v803, %v1796
        %v1845 = vadd.f32 %v804, %v1798
        %v1846 = vadd.f32 %v805, %v1801
        %v1847 = vadd.f32 %v806, %v1803
        %v1848 = vadd.f32 %v807, %v1806
        %v1849 = vadd.f32 %v808, %v1808
        %v1850 = vadd.f32 %v809, %v1811
        %v1851 = vadd.f32 %v810, %v1813
        %v1852 = vadd.f32 %v811, %v1816
        %v1853 = vadd.f32 %v812, %v1818
        %v1854 = vadd.f32 %v813, %v1821
        %v1855 = vadd.f32 %v814, %v1823
        %vm1880 = vcmask 1045504
        %v1881 = vrot.slane %v1735, 2
        %v1882 = vrot.slane %v1736, 2
        %v1883 = vsel %vm1880, %v1881, %v1882
        %v1884 = vrot.slane %v1737, 2
        %v1885 = vsel %vm1880, %v1882, %v1884
        %v1886 = vrot.slane %v1738, 2
        %v1887 = vrot.slane %v1739, 2
        %v1888 = vsel %vm1880, %v1886, %v1887
        %v1889 = vrot.slane %v1740, 2
        %v1890 = vsel %vm1880, %v1887, %v1889
        %v1891 = vrot.slane %v1741, 2
        %v1892 = vrot.slane %v1742, 2
        %v1893 = vsel %vm1880, %v1891, %v1892
        %v1894 = vrot.slane %v1743, 2
        %v1895 = vsel %vm1880, %v1892, %v1894
        %v1896 = vrot.slane %v1744, 2
        %v1897 = vrot.slane %v1745, 2
        %v1898 = vsel %vm1880, %v1896, %v1897
        %v1899 = vrot.slane %v1746, 2
        %v1900 = vsel %vm1880, %v1897, %v1899
        %v1901 = vrot.slane %v1747, 2
        %v1902 = vrot.slane %v1748, 2
        %v1903 = vsel %vm1880, %v1901, %v1902
        %v1904 = vrot.slane %v1749, 2
        %v1905 = vsel %vm1880, %v1902, %v1904
        %v1906 = vrot.slane %v1750, 2
        %v1907 = vrot.slane %v1751, 2
        %v1908 = vsel %vm1880, %v1906, %v1907
        %v1909 = vrot.slane %v1752, 2
        %v1910 = vsel %vm1880, %v1907, %v1909
        %v1911 = vrot.slane %v1753, 2
        %v1912 = vrot.slane %v1754, 2
        %v1913 = vsel %vm1880, %v1911, %v1912
        %v1914 = vrot.slane %v1755, 2
        %v1915 = vsel %vm1880, %v1912, %v1914
        %v1916 = vrot.slane %v1756, 2
        %v1917 = vrot.slane %v1757, 2
        %v1918 = vsel %vm1880, %v1916, %v1917
        %v1919 = vrot.slane %v1758, 2
        %v1920 = vsel %vm1880, %v1917, %v1919
        %v1937 = vadd.f32 %v1840, %v1883
        %v1938 = vadd.f32 %v1841, %v1885
        %v1939 = vadd.f32 %v1842, %v1888
        %v1940 = vadd.f32 %v1843, %v1890
        %v1941 = vadd.f32 %v1844, %v1893
        %v1942 = vadd.f32 %v1845, %v1895
        %v1943 = vadd.f32 %v1846, %v1898
        %v1944 = vadd.f32 %v1847, %v1900
        %v1945 = vadd.f32 %v1848, %v1903
        %v1946 = vadd.f32 %v1849, %v1905
        %v1947 = vadd.f32 %v1850, %v1908
        %v1948 = vadd.f32 %v1851, %v1910
        %v1949 = vadd.f32 %v1852, %v1913
        %v1950 = vadd.f32 %v1853, %v1915
        %v1951 = vadd.f32 %v1854, %v1918
        %v1952 = vadd.f32 %v1855, %v1920
        %v1954 = vcombine.high %v422, %v422
        %v1956 = vunpack.c.l.s4 1966171168
        %v1957 = vunpack.c.0.s8 %v1956
        %v1958 = vlaneseq
        %v1959 = vshrl.u32 %v1958, 7
        %v1960 = vsub.s32 %v1957, %v1959
        %v1961 = vrot.slane %v422, %v1960
        %v1963 = vunpack.c.l.s4 1966171168
        %v1964 = vunpack.c.0.s8 %v1963
        %v1965 = vlaneseq
        %v1966 = vshrl.u32 %v1965, 7
        %v1967 = vsub.s32 %v1964, %v1966
        %v1968 = vrot.slane %v1954, %v1967
        %v1969 = vcombine.high %v1961, %v1961
        %v1970 = vcombine.high %v1968, %v1968
        %v1972 = vunpack.c.l.s4 1966171168
        %v1973 = vunpack.c.0.s8 %v1972
        %v1974 = vlaneseq
        %v1975 = vshrl.u32 %v1974, 7
        %v1976 = vsub.s32 %v1973, %v1975
        %v1977 = vrot.slane %v1961, %v1976
        %v1979 = vunpack.c.l.s4 1966171168
        %v1980 = vunpack.c.0.s8 %v1979
        %v1981 = vlaneseq
        %v1982 = vshrl.u32 %v1981, 7
        %v1983 = vsub.s32 %v1980, %v1982
        %v1984 = vrot.slane %v1968, %v1983
        %v1986 = vunpack.c.l.s4 1966171168
        %v1987 = vunpack.c.0.s8 %v1986
        %v1988 = vlaneseq
        %v1989 = vshrl.u32 %v1988, 7
        %v1990 = vsub.s32 %v1987, %v1989
        %v1991 = vrot.slane %v1969, %v1990
        %v1993 = vunpack.c.l.s4 1966171168
        %v1994 = vunpack.c.0.s8 %v1993
        %v1995 = vlaneseq
        %v1996 = vshrl.u32 %v1995, 7
        %v1997 = vsub.s32 %v1994, %v1996
        %v1998 = vrot.slane %v1970, %v1997
        %v1999 = vcombine.high %v1977, %v1977
        %v2000 = vcombine.high %v1984, %v1984
        %v2001 = vcombine.high %v1991, %v1991
        %v2002 = vcombine.high %v1998, %v1998
        %v2003 = vlaneseq
        %v2004 = vshrl.u32 %v2003, 7
        %v2005 = vsub.s32 0, %v2004
        %v2006 = vrot.slane %v1977, %v2005
        %v2007 = vlaneseq
        %v2008 = vshrl.u32 %v2007, 7
        %v2009 = vsub.s32 0, %v2008
        %v2010 = vrot.slane %v1991, %v2009
        %v2011 = vlaneseq
        %v2012 = vshrl.u32 %v2011, 7
        %v2013 = vsub.s32 0, %v2012
        %v2014 = vrot.slane %v1999, %v2013
        %v2015 = vlaneseq
        %v2016 = vshrl.u32 %v2015, 7
        %v2017 = vsub.s32 0, %v2016
        %v2018 = vrot.slane %v2001, %v2017
        %v2019 = vlaneseq
        %v2020 = vshrl.u32 %v2019, 7
        %v2021 = vsub.s32 0, %v2020
        %v2022 = vrot.slane %v1984, %v2021
        %v2023 = vlaneseq
        %v2024 = vshrl.u32 %v2023, 7
        %v2025 = vsub.s32 0, %v2024
        %v2026 = vrot.slane %v1998, %v2025
        %v2027 = vlaneseq
        %v2028 = vshrl.u32 %v2027, 7
        %v2029 = vsub.s32 0, %v2028
        %v2030 = vrot.slane %v2000, %v2029
        %v2031 = vlaneseq
        %v2032 = vshrl.u32 %v2031, 7
        %v2033 = vsub.s32 0, %v2032
        %v2034 = vrot.slane %v2002, %v2033
        %v2043 = vadd.f32 %v1937, %v2006
        %v2044 = vadd.f32 %v1938, %v2006
        %v2045 = vadd.f32 %v1939, %v2010
        %v2046 = vadd.f32 %v1940, %v2010
        %v2047 = vadd.f32 %v1941, %v2014
        %v2048 = vadd.f32 %v1942, %v2014
        %v2049 = vadd.f32 %v1943, %v2018
        %v2050 = vadd.f32 %v1944, %v2018
        %v2051 = vadd.f32 %v1945, %v2022
        %v2052 = vadd.f32 %v1946, %v2022
        %v2053 = vadd.f32 %v1947, %v2026
        %v2054 = vadd.f32 %v1948, %v2026
        %v2055 = vadd.f32 %v1949, %v2030
        %v2056 = vadd.f32 %v1950, %v2030
        %v2057 = vadd.f32 %v1951, %v2034
        %v2058 = vadd.f32 %v1952, %v2034
        %v2059 = vmax.f32 %v2043, 0.0
        %v2060 = vmax.f32 %v2044, 0.0
        %v2061 = vmax.f32 %v2045, 0.0
        %v2062 = vmax.f32 %v2046, 0.0
        %v2063 = vmax.f32 %v2047, 0.0
        %v2064 = vmax.f32 %v2048, 0.0
        %v2065 = vmax.f32 %v2049, 0.0
        %v2066 = vmax.f32 %v2050, 0.0
        %v2067 = vmax.f32 %v2051, 0.0
        %v2068 = vmax.f32 %v2052, 0.0
        %v2069 = vmax.f32 %v2053, 0.0
        %v2070 = vmax.f32 %v2054, 0.0
        %v2071 = vmax.f32 %v2055, 0.0
        %v2072 = vmax.f32 %v2056, 0.0
        %v2073 = vmax.f32 %v2057, 0.0
        %v2074 = vmax.f32 %v2058, 0.0
        %vm2075 = vcmask 130048
        %2076 = vst.msk [vmem:[%s218] sm:$0xff] %vm2075, %v2059
        %2077 = vst.msk [vmem:[%s218 + $0x8] sm:$0xff] %vm2075, %v2060
        %2078 = vst.msk [vmem:[%s218 + $0x10] sm:$0xff] %vm2075, %v2061
        %2079 = vst.msk [vmem:[%s218 + $0x18] sm:$0xff] %vm2075, %v2062
        %2080 = vst.msk [vmem:[%s218 + $0x20] sm:$0xff] %vm2075, %v2063
        %2081 = vst.msk [vmem:[%s218 + $0x28] sm:$0xff] %vm2075, %v2064
        %2082 = vst.msk [vmem:[%s218 + $0x30] sm:$0xff] %vm2075, %v2065
        %2083 = vst.msk [vmem:[%s218 + $0x38] sm:$0xff] %vm2075, %v2066
        %2084 = vst.msk [vmem:[%s218 + $0x40] sm:$0xff] %vm2075, %v2067
        %2085 = vst.msk [vmem:[%s218 + $0x48] sm:$0xff] %vm2075, %v2068
        %2086 = vst.msk [vmem:[%s218 + $0x50] sm:$0xff] %vm2075, %v2069
        %2087 = vst.msk [vmem:[%s218 + $0x58] sm:$0xff] %vm2075, %v2070
        %2088 = vst.msk [vmem:[%s218 + $0x60] sm:$0xff] %vm2075, %v2071
        %2089 = vst.msk [vmem:[%s218 + $0x68] sm:$0xff] %vm2075, %v2072
        %2090 = vst.msk [vmem:[%s218 + $0x70] sm:$0xff] %vm2075, %v2073
        %2091 = vst.msk [vmem:[%s218 + $0x78] sm:$0xff] %vm2075, %v2074
        %s2092 = sand.u32 %s119, 1
        %s2093 = scalar_lea.sflag [#allocation4], %s2092
        %s2094 = sand.u32 %s119, 1
        %s2095 = smul.addr %s2094, 128
        %s2096 = scalar_lea.vmem [#allocation3], %s2095
        // Predicated region
        $region33: #{dwconv_bn_relu.1} parent=31 // pred_check
          %p2097 = pneg %p129
        $region34: #{dwconv_bn_relu.1} parent=31 // pred_check_branch
          %2099 = sbr.rel (%p2097) target = $region36
        $region35: #{dwconv_bn_relu.1} parent=31 // pred_region
          %s2100 = smul.u32 8, %s21
          %s2102 = ssub.s32 2048, 2048
          %2103 = vsyncadd %s2093, %s2102
          %s2104 = smul.addr %s2100, 2
          %s2105 = smul.addr %s22, 16
          %s2106 = sadd.s32 %s2104, %s2105
          %s2107 = smul.addr %s2106, 128
          %s2108 = scalar_lea.hbm %s3, %s2107
          %s2109 = sshll.u32 %s2096, 4
          %s2110 = int_to_ptr.vmem [resolvable:$true] %s2109
          %2115 = dma.vmem_to_hbm [thread:$0]  %s2110, 2048, %s2108, %s2093, 128, 128, 8
        $region36: #{dwconv_bn_relu.1} parent=31 // pred_fallthru
          _
      $region32: #{dwconv_bn_relu.1} parent=5 // pred_fallthru
        _
      %p2116 = scmp.le.s32.totalorder 2, %s12
      // Predicated region
      $region37: #{dwconv_bn_relu.1} parent=5 // pred_check
        %p2117 = pneg %p2116
      $region38: #{dwconv_bn_relu.1} parent=5 // pred_check_branch
        %2119 = sbr.rel (%p2117) target = $region40
      $region39: #{dwconv_bn_relu.1} parent=5 // pred_region
        %s2120 = ssub.s32 %s12, 2
        // Predicated region
        $region41: #{dwconv_bn_relu.1} parent=39 // pred_check
          %p2121 = pneg %p135
        $region42: #{dwconv_bn_relu.1} parent=39 // pred_check_branch
          %2123 = sbr.rel (%p2121) target = $region44
        $region43: #{dwconv_bn_relu.1} parent=39 // pred_region
          %s2124 = sand.u32 %s120, 1
          %s2125 = scalar_lea.sflag [#allocation4], %s2124
          %s2126 = sand.u32 %s120, 1
          %s2127 = smul.addr %s2126, 128
          %s2128 = scalar_lea.vmem [#allocation3], %s2127
          %2129 = dma.done %s2125, 2048
        $region44: #{dwconv_bn_relu.1} parent=39 // pred_fallthru
          _
      $region40: #{dwconv_bn_relu.1} parent=5 // pred_fallthru
        _
    $region6: #{dwconv_bn_relu.1} parent=1 // loop_footer
      %s16 = sadd.s32 1, %s12
    $region7: #{dwconv_bn_relu.1} parent=1 // loop_footer_branch
      %11 = sbr.rel target = $region3
    $region8: #{dwconv_bn_relu.1} parent=1 // loop_exit
      _
    %2130 = vsyncpa [#allocation4], 1
    %s2131 = scalar_lea.sflag [#allocation4], 1
    %2132 = vsyncpa %s2131, 1

</llo_original>
